<compile_context>
chip_gen: v7x
topology: tpu7x:2x2x1
jax: 0.10.0
libtpu: 0.0.40
codegen_flags: <defaults>
</compile_context>

<pallas_src>
import math
import functools

import jax
import jax.numpy as jnp
from jax import lax
from jax.experimental import pallas as pl
from jax.experimental.pallas import tpu as pltpu


# ----------------------------------------------------------------------------
# BlockSpec helpers
# ----------------------------------------------------------------------------

def _vmem():
    """Whole-array-in-VMEM spec (used with grid=())."""
    return pl.BlockSpec(memory_space=pltpu.MemorySpace.VMEM)


def _full(shape):
    """Explicit full-array block (used with grid=(1,))."""
    nd = len(shape)
    return pl.BlockSpec(tuple(shape), lambda *_: (0,) * nd)


def _patient_row_spec(D, pid_pos):
    """DMA only patient_dynamic[patientid] (array pre-reshaped to [P,1,D]).

    The index_map reads the scalar-prefetched patientid ref, so the gather
    happens in the DMA descriptor — no full patient table in VMEM.
    """
    def imap(i, *prefetch):
        return (prefetch[pid_pos][0], 0, 0)
    return pl.BlockSpec((1, 1, D), imap)


# ----------------------------------------------------------------------------
# In-kernel helpers
# ----------------------------------------------------------------------------

def _gcn2(x, adj_a, init_s, w1, w2):
    """Two stacked GCN_1 layers with pre-folded scalings:
       h = relu(adj_a @ (x @ W) + init_s), adj_a = alpha*adj, init_s = (1-a)*init.
    """
    s1 = jnp.dot(x, w1, preferred_element_type=jnp.float32)
    h1 = jnp.maximum(jnp.dot(adj_a, s1, preferred_element_type=jnp.float32)
                     + init_s, 0.0)
    # TODO(synk): F.dropout between gc1 and gc2 is identity here (eval mode).
    s2 = jnp.dot(h1, w2, preferred_element_type=jnp.float32)
    return jnp.maximum(jnp.dot(adj_a, s2, preferred_element_type=jnp.float32)
                       + init_s, 0.0)


def _select_matrix(ids_ref, n_rows, n_src):
    """One-hot row-selection matrix [n_rows, n_src] built from SMEM scalars."""
    col = lax.broadcasted_iota(jnp.int32, (n_rows, n_src), 1)
    row = lax.broadcasted_iota(jnp.int32, (n_rows, n_src), 0)
    sel = jnp.zeros((n_rows, n_src), jnp.float32)
    for i in range(n_rows):
        sel = sel + jnp.where((row == i) & (col == ids_ref[i]), 1.0, 0.0)
    return sel


def _gather_rows(src, ids_ref, n_rows, n_src):
    """src[ids] as a one-hot matmul (avoids dynamic sublane slicing)."""
    sel = _select_matrix(ids_ref, n_rows, n_src)
    return jnp.dot(sel, src, preferred_element_type=jnp.float32)


def _mean_rows(src, ids_ref, n_rows, n_src):
    """mean(src[ids], axis=0, keepdims=True), duplicates counted like torch."""
    col = lax.broadcasted_iota(jnp.int32, (1, n_src), 1)
    sel = jnp.zeros((1, n_src), jnp.float32)
    for i in range(n_rows):
        sel = sel + jnp.where(col == ids_ref[i], 1.0, 0.0)
    sel = sel * (1.0 / n_rows)
    return jnp.dot(sel, src, preferred_element_type=jnp.float32)


def _l2norm(h):
    """F.normalize(h, dim=1): x / max(||x||, 1e-12) via rsqrt on squared norm."""
    ss = jnp.sum(h * h, axis=-1, keepdims=True)
    return h * lax.rsqrt(jnp.maximum(ss, 1e-24))


def _rnn_tanh_norm(pe_in, td, w_td, feat, w_feat, w_in, h, whh, bias):
    """tanh RNNCell with decomposed input matmul, followed by L2-normalize."""
    z = (jnp.dot(pe_in, w_in, preferred_element_type=jnp.float32)
         + td * w_td
         + jnp.dot(feat, w_feat, preferred_element_type=jnp.float32)
         + jnp.dot(h, whh, preferred_element_type=jnp.float32)
         + bias)
    return _l2norm(jnp.tanh(z))


# ----------------------------------------------------------------------------
# Fused kernels (one pallas_call per forward branch)
# ----------------------------------------------------------------------------

def _code_update_kernel(codeid_ref, patientid_ref,                       # SMEM
                        code_dyn_ref, adj_a_ref, init_s_ref, pat_row_ref,
                        td_ref, feat_ref, gc1_ref, gc2_ref,
                        w_pe_ref, w_td_ref, w_feat_ref, whh_ref, bias_ref,
                        o_ref, *, nc, n_codes):
    h2 = _gcn2(code_dyn_ref[...], adj_a_ref[...], init_s_ref[...],
               gc1_ref[...], gc2_ref[...])
    code_embed = _gather_rows(h2, codeid_ref, nc, n_codes)          # [nc, D]
    pe = pat_row_ref[...][0]                                        # [1, D]
    o_ref[...] = _rnn_tanh_norm(pe, td_ref[...], w_td_ref[...],
                                feat_ref[...], w_feat_ref[...],
                                w_pe_ref[...], code_embed, whh_ref[...],
                                bias_ref[...])


def _ancestor_update_kernel(ancid_ref,                                   # SMEM
                            code_dyn_ref, adj_a_ref, init_s_ref,
                            gc1_ref, gc2_ref, o_ref, *, na, n_codes):
    h2 = _gcn2(code_dyn_ref[...], adj_a_ref[...], init_s_ref[...],
               gc1_ref[...], gc2_ref[...])
    o_ref[...] = _l2norm(_gather_rows(h2, ancid_ref, na, n_codes))


def _code_and_ancestor_kernel(codeid_ref, patientid_ref, ancid_ref,      # SMEM
                              code_dyn_ref, adj_a_ref, init_s_ref, pat_row_ref,
                              td_ref, feat_ref, gc1_ref, gc2_ref,
                              w_pe_ref, w_td_ref, w_feat_ref, whh_ref, bias_ref,
                              code_o_ref, anc_o_ref, *, nc, na, n_codes):
    """Deduplicated GCN pass: one 2-layer GCN feeding both updates."""
    h2 = _gcn2(code_dyn_ref[...], adj_a_ref[...], init_s_ref[...],
               gc1_ref[...], gc2_ref[...])
    code_embed = _gather_rows(h2, codeid_ref, nc, n_codes)
    pe = pat_row_ref[...][0]
    code_o_ref[...] = _rnn_tanh_norm(pe, td_ref[...], w_td_ref[...],
                                     feat_ref[...], w_feat_ref[...],
                                     w_pe_ref[...], code_embed, whh_ref[...],
                                     bias_ref[...])
    anc_o_ref[...] = _l2norm(_gather_rows(h2, ancid_ref, na, n_codes))


def _patient_update_kernel(patientid_ref, codeid_ref,                    # SMEM
                           pat_row_ref, code_dyn_ref, td_ref, feat_ref,
                           w_ce_ref, w_td_ref, w_feat_ref, whh_ref, bias_ref,
                           o_ref, *, nc, n_codes):
    pe = pat_row_ref[...][0]                                             # [1, D]
    ce_mean = _mean_rows(code_dyn_ref[...], codeid_ref, nc, n_codes)     # [1, D]
    o_ref[...] = _rnn_tanh_norm(ce_mean, td_ref[...], w_td_ref[...],
                                feat_ref[...], w_feat_ref[...],
                                w_ce_ref[...], pe, whh_ref[...],
                                bias_ref[...])


def _project_kernel(patientid_ref,                                       # SMEM
                    pat_row_ref, td_ref, w_ref, b_ref, o_ref):
    pe = pat_row_ref[...][0]                                             # [1, D]
    o_ref[...] = pe * (1.0 + td_ref[...] * w_ref[...] + b_ref[...])


# ----------------------------------------------------------------------------
# Jitted branch wrappers (single pallas_call each)
# ----------------------------------------------------------------------------

def _arb1():
    return pltpu.CompilerParams(dimension_semantics=("arbitrary",))


@jax.jit
def _code_update_fwd(params, patient_dynamic, code_dynamic, init_code_dynamic,
                     adj, patientid, codeid, timediffs, features, alpha):
    n_codes, D = code_dynamic.shape
    n_patients = patient_dynamic.shape[0]
    nc = codeid.shape[0]
    adj_a = alpha * adj
    init_s = (1.0 - alpha) * init_code_dynamic
    pat3 = patient_dynamic.reshape(n_patients, 1, D)
    kern = functools.partial(_code_update_kernel, nc=nc, n_codes=n_codes)
    gs = pltpu.PrefetchScalarGridSpec(
        num_scalar_prefetch=2, grid=(1,),
        in_specs=[_full(code_dynamic.shape), _full(adj.shape),
                  _full(init_code_dynamic.shape),
                  _patient_row_spec(D, pid_pos=1),
                  _full(timediffs.shape), _full(features.shape),
                  _full(params["gc1_w"].shape), _full(params["gc2_w"].shape),
                  _full(params["code_w_pe"].shape),
                  _full(params["code_w_td"].shape),
                  _full(params["code_w_feat"].shape),
                  _full(params["code_whh"].shape),
                  _full(params["code_bias"].shape)],
        out_specs=_full((nc, D)))
    return pl.pallas_call(
        kern, grid_spec=gs, compiler_params=_arb1(),
        out_shape=jax.ShapeDtypeStruct((nc, D), jnp.float32),
    )(codeid.astype(jnp.int32), patientid.astype(jnp.int32),
      code_dynamic, adj_a, init_s, pat3, timediffs, features,
      params["gc1_w"], params["gc2_w"],
      params["code_w_pe"], params["code_w_td"], params["code_w_feat"],
      params["code_whh"], params["code_bias"])


@jax.jit
def _ancestor_update_fwd(params, code_dynamic, init_code_dynamic, adj,
                         ancestorid, alpha):
    n_codes, D = code_dynamic.shape
    na = ancestorid.shape[0]
    adj_a = alpha * adj
    init_s = (1.0 - alpha) * init_code_dynamic
    kern = functools.partial(_ancestor_update_kernel, na=na, n_codes=n_codes)
    gs = pltpu.PrefetchScalarGridSpec(
        num_scalar_prefetch=1, grid=(),
        in_specs=[_vmem()] * 5, out_specs=_vmem())
    return pl.pallas_call(
        kern, grid_spec=gs,
        out_shape=jax.ShapeDtypeStruct((na, D), jnp.float32),
    )(ancestorid.astype(jnp.int32),
      code_dynamic, adj_a, init_s, params["gc1_w"], params["gc2_w"])


@jax.jit
def _code_and_ancestor_fwd(params, patient_dynamic, code_dynamic,
                           init_code_dynamic, adj, patientid, codeid,
                           ancestorid, timediffs, features, alpha):
    n_codes, D = code_dynamic.shape
    n_patients = patient_dynamic.shape[0]
    nc = codeid.shape[0]
    na = ancestorid.shape[0]
    adj_a = alpha * adj
    init_s = (1.0 - alpha) * init_code_dynamic
    pat3 = patient_dynamic.reshape(n_patients, 1, D)
    kern = functools.partial(_code_and_ancestor_kernel, nc=nc, na=na,
                             n_codes=n_codes)
    gs = pltpu.PrefetchScalarGridSpec(
        num_scalar_prefetch=3, grid=(1,),
        in_specs=[_full(code_dynamic.shape), _full(adj.shape),
                  _full(init_code_dynamic.shape),
                  _patient_row_spec(D, pid_pos=1),
                  _full(timediffs.shape), _full(features.shape),
                  _full(params["gc1_w"].shape), _full(params["gc2_w"].shape),
                  _full(params["code_w_pe"].shape),
                  _full(params["code_w_td"].shape),
                  _full(params["code_w_feat"].shape),
                  _full(params["code_whh"].shape),
                  _full(params["code_bias"].shape)],
        out_specs=(_full((nc, D)), _full((na, D))))
    return pl.pallas_call(
        kern, grid_spec=gs, compiler_params=_arb1(),
        out_shape=(jax.ShapeDtypeStruct((nc, D), jnp.float32),
                   jax.ShapeDtypeStruct((na, D), jnp.float32)),
    )(codeid.astype(jnp.int32), patientid.astype(jnp.int32),
      ancestorid.astype(jnp.int32),
      code_dynamic, adj_a, init_s, pat3, timediffs, features,
      params["gc1_w"], params["gc2_w"],
      params["code_w_pe"], params["code_w_td"], params["code_w_feat"],
      params["code_whh"], params["code_bias"])


@jax.jit
def _patient_update_fwd(params, patient_dynamic, code_dynamic,
                        patientid, codeid, timediffs, features):
    n_codes, D = code_dynamic.shape
    n_patients = patient_dynamic.shape[0]
    nc = codeid.shape[0]
    pat3 = patient_dynamic.reshape(n_patients, 1, D)
    kern = functools.partial(_patient_update_kernel, nc=nc, n_codes=n_codes)
    gs = pltpu.PrefetchScalarGridSpec(
        num_scalar_prefetch=2, grid=(1,),
        in_specs=[_patient_row_spec(D, pid_pos=0),
                  _full(code_dynamic.shape),
                  _full(timediffs.shape), _full(features.shape),
                  _full(params["pat_w_ce"].shape),
                  _full(params["pat_w_td"].shape),
                  _full(params["pat_w_feat"].shape),
                  _full(params["pat_whh"].shape),
                  _full(params["pat_bias"].shape)],
        out_specs=_full((1, D)))
    return pl.pallas_call(
        kern, grid_spec=gs, compiler_params=_arb1(),
        out_shape=jax.ShapeDtypeStruct((1, D), jnp.float32),
    )(patientid.astype(jnp.int32), codeid.astype(jnp.int32),
      pat3, code_dynamic, timediffs, features,
      params["pat_w_ce"], params["pat_w_td"], params["pat_w_feat"],
      params["pat_whh"], params["pat_bias"])


@jax.jit
def _project_fwd(params, patient_dynamic, patientid, timediffs):
    n_patients, D = patient_dynamic.shape
    pat3 = patient_dynamic.reshape(n_patients, 1, D)
    gs = pltpu.PrefetchScalarGridSpec(
        num_scalar_prefetch=1, grid=(1,),
        in_specs=[_patient_row_spec(D, pid_pos=0),
                  _full(timediffs.shape),
                  _full(params["embed_w"].shape),
                  _full(params["embed_b"].shape)],
        out_specs=_full((1, D)))
    return pl.pallas_call(
        _project_kernel, grid_spec=gs, compiler_params=_arb1(),
        out_shape=jax.ShapeDtypeStruct((1, D), jnp.float32),
    )(patientid.astype(jnp.int32),
      pat3, timediffs, params["embed_w"], params["embed_b"])


# ----------------------------------------------------------------------------
# Model (parameters + forward dispatch)
# ----------------------------------------------------------------------------

def init_params(key, dynamic_size, feature_size):
    D = dynamic_size
    stdv_gc = 1.0 / math.sqrt(D)     # GCN_1: uniform(-1/sqrt(out), 1/sqrt(out))
    stdv_rnn = 1.0 / math.sqrt(D)    # RNNCell default init
    stdv_lin = 1.0 / math.sqrt(1)    # NormalLinear(1, D)

    ks = jax.random.split(key, 16)
    u = lambda k, shape, s: jax.random.uniform(k, shape, jnp.float32, -s, s)
    n = lambda k, shape, s: s * jax.random.normal(k, shape, jnp.float32)

    params = {
        # GCN weights [D, D]
        "gc1_w": u(ks[0], (D, D), stdv_gc),
        "gc2_w": u(ks[1], (D, D), stdv_gc),
        # code_update RNNCell: W_ih split (pre-transposed to [in, out]), biases pre-summed
        "code_w_pe":   u(ks[2], (D, D), stdv_rnn),
        "code_w_td":   u(ks[3], (1, D), stdv_rnn),
        "code_w_feat": u(ks[4], (feature_size, D), stdv_rnn),
        "code_whh":    u(ks[5], (D, D), stdv_rnn),
        "code_bias":   u(ks[6], (1, D), stdv_rnn) + u(ks[7], (1, D), stdv_rnn),
        # patient_update RNNCell
        "pat_w_ce":   u(ks[8], (D, D), stdv_rnn),
        "pat_w_td":   u(ks[9], (1, D), stdv_rnn),
        "pat_w_feat": u(ks[10], (feature_size, D), stdv_rnn),
        "pat_whh":    u(ks[11], (D, D), stdv_rnn),
        "pat_bias":   u(ks[12], (1, D), stdv_rnn) + u(ks[13], (1, D), stdv_rnn),
        # embed_layer = NormalLinear(1, D): weight [D,1] stored transposed [1,D]
        "embed_w": n(ks[14], (1, D), stdv_lin),
        "embed_b": n(ks[15], (1, D), stdv_lin),
    }
    return params


class ModelTree2_1Pallas:
    def __init__(self, params, alpha, dropout):
        self.params = params
        self.alpha = float(alpha)
        self.dropout = dropout   # eval mode -> dropout is identity

    def forward(self, patient_dynamic, code_dynamic, init_code_dynamic, adj,
                patientid, codeid, ancestorid, features=None, timediffs=None,
                select=None):
        p = self.params
        if select == "code_update":
            return _code_update_fwd(p, patient_dynamic, code_dynamic,
                                    init_code_dynamic, adj, patientid, codeid,
                                    timediffs, features, self.alpha)
        elif select == "ancestor_update":
            return _ancestor_update_fwd(p, code_dynamic, init_code_dynamic,
                                        adj, ancestorid, self.alpha)
        elif select == "patient_update":
            return _patient_update_fwd(p, patient_dynamic, code_dynamic,
                                       patientid, codeid, timediffs, features)
        elif select == "project":
            return _project_fwd(p, patient_dynamic, patientid, timediffs)
        else:
            raise ValueError(f"unknown select={select}")

    def code_and_ancestor_update(self, patient_dynamic, code_dynamic,
                                 init_code_dynamic, adj, patientid, codeid,
                                 ancestorid, features, timediffs):
        """Fused variant: one GCN pass serving both code & ancestor updates."""
        return _code_and_ancestor_fwd(self.params, patient_dynamic,
                                      code_dynamic, init_code_dynamic, adj,
                                      patientid, codeid, ancestorid,
                                      timediffs, features, self.alpha)


# ----------------------------------------------------------------------------
# Pure-JAX reference (mirrors the torch module, eval mode)
# ----------------------------------------------------------------------------

def _ref_gcn2(x, adj, init, w1, w2, alpha):
    def gcn(h):
        return jnp.maximum(alpha * (adj @ (h @ w1 if h is x else h @ w2))
                           + (1.0 - alpha) * init, 0.0)
    h1 = jnp.maximum(alpha * (adj @ (x @ w1)) + (1.0 - alpha) * init, 0.0)
    return jnp.maximum(alpha * (adj @ (h1 @ w2)) + (1.0 - alpha) * init, 0.0)


def _ref_normalize(x):
    n = jnp.sqrt(jnp.sum(x * x, axis=1, keepdims=True))
    return x / jnp.maximum(n, 1e-12)


def _ref_code_update(p, pat_dyn, code_dyn, init, adj, pid, cid, td, ft, alpha):
    x = _ref_gcn2(code_dyn, adj, init, p["gc1_w"], p["gc2_w"], alpha)
    code_embed = x[cid]
    pe = jnp.tile(pat_dyn[pid], (cid.shape[0], 1))
    inp = jnp.concatenate([pe, td, ft], axis=1)
    w_ihT = jnp.concatenate([p["code_w_pe"], p["code_w_td"], p["code_w_feat"]], 0)
    z = inp @ w_ihT + code_embed @ p["code_whh"] + p["code_bias"]
    return _ref_normalize(jnp.tanh(z))


def _ref_ancestor_update(p, code_dyn, init, adj, aid, alpha):
    x = _ref_gcn2(code_dyn, adj, init, p["gc1_w"], p["gc2_w"], alpha)
    return _ref_normalize(x[aid])


def _ref_patient_update(p, pat_dyn, code_dyn, pid, cid, td, ft):
    pe = pat_dyn[pid]
    ce = jnp.mean(code_dyn[cid], axis=0, keepdims=True)
    inp = jnp.concatenate([ce, td, ft], axis=1)
    w_ihT = jnp.concatenate([p["pat_w_ce"], p["pat_w_td"], p["pat_w_feat"]], 0)
    z = inp @ w_ihT + pe @ p["pat_whh"] + p["pat_bias"]
    return _ref_normalize(jnp.tanh(z))


def _ref_project(p, pat_dyn, pid, td):
    pe = pat_dyn[pid]
    return pe * (1.0 + td @ p["embed_w"] + p["embed_b"])


# ----------------------------------------------------------------------------
# Main
# ----------------------------------------------------------------------------

if __name__ == "__main__":
    D = 32          # args.dynamic_size
    FEAT = 8        # args.feature_size
    ALPHA = 0.6     # args.alpha
    DROPOUT = 0.2   # args.dropout
    N_CODES = 16    # number of nodes in the code graph
    N_PATIENT = 8

    key = jax.random.PRNGKey(0)
    kp, kd = jax.random.split(key)
    params = init_params(kp, D, FEAT)
    model = ModelTree2_1Pallas(params, ALPHA, DROPOUT)

    ks = jax.random.split(kd, 8)
    patient_dynamic = jax.random.normal(ks[0], (N_PATIENT, D), jnp.float32)
    code_dynamic = jax.random.normal(ks[1], (N_CODES, D), jnp.float32)
    init_code_dynamic = jax.random.normal(ks[2], (N_CODES, D), jnp.float32)
    # row-normalized dense adjacency (spmm handled as dense matmul)
    adj_raw = jax.random.uniform(ks[3], (N_CODES, N_CODES), jnp.float32)
    adj = adj_raw / jnp.sum(adj_raw, axis=1, keepdims=True)

    patientid = jnp.array([2], dtype=jnp.int32)
    codeid = jnp.array([0, 3, 5], dtype=jnp.int32)
    ancestorid = jnp.array([1, 4], dtype=jnp.int32)

    nc = codeid.shape[0]
    timediffs_code = jax.random.uniform(ks[4], (nc, 1), jnp.float32)
    features_code = jax.random.normal(ks[5], (nc, FEAT), jnp.float32)
    timediffs_pat = jax.random.uniform(ks[6], (1, 1), jnp.float32)
    features_pat = jax.random.normal(ks[7], (1, FEAT), jnp.float32)

    out_code = model.forward(patient_dynamic, code_dynamic, init_code_dynamic,
                             adj, patientid, codeid, ancestorid,
                             features=features_code, timediffs=timediffs_code,
                             select="code_update")
    out_anc = model.forward(patient_dynamic, code_dynamic, init_code_dynamic,
                            adj, patientid, codeid, ancestorid,
                            select="ancestor_update")
    out_pat = model.forward(patient_dynamic, code_dynamic, init_code_dynamic,
                            adj, patientid, codeid, ancestorid,
                            features=features_pat, timediffs=timediffs_pat,
                            select="patient_update")
    out_proj = model.forward(patient_dynamic, code_dynamic, init_code_dynamic,
                             adj, patientid, codeid, ancestorid,
                             timediffs=timediffs_pat, select="project")
    # Deduplicated combined pass (GCN computed once for both updates).
    out_code2, out_anc2 = model.code_and_ancestor_update(
        patient_dynamic, code_dynamic, init_code_dynamic, adj,
        patientid, codeid, ancestorid, features_code, timediffs_code)

    jax.block_until_ready((out_code, out_anc, out_pat, out_proj,
                           out_code2, out_anc2))

    assert out_code.shape == (nc, D)
    assert out_anc.shape == (ancestorid.shape[0], D)
    assert out_pat.shape == (1, D)
    assert out_proj.shape == (1, D)
    assert out_code2.shape == (nc, D)
    assert out_anc2.shape == (ancestorid.shape[0], D)
    # Combined kernel must agree with the per-branch kernels.
    assert bool(jnp.allclose(out_code, out_code2, atol=1e-5))
    assert bool(jnp.allclose(out_anc, out_anc2, atol=1e-5))

    # Pure-JAX reference checks (semantics of the torch module in eval mode).
    ref_code = _ref_code_update(params, patient_dynamic, code_dynamic,
                                init_code_dynamic, adj, patientid, codeid,
                                timediffs_code, features_code, ALPHA)
    ref_anc = _ref_ancestor_update(params, code_dynamic, init_code_dynamic,
                                   adj, ancestorid, ALPHA)
    ref_pat = _ref_patient_update(params, patient_dynamic, code_dynamic,
                                  patientid, codeid, timediffs_pat,
                                  features_pat)
    ref_proj = _ref_project(params, patient_dynamic, patientid, timediffs_pat)
    assert bool(jnp.allclose(out_code, ref_code, atol=1e-4, rtol=1e-4))
    assert bool(jnp.allclose(out_anc, ref_anc, atol=1e-4, rtol=1e-4))
    assert bool(jnp.allclose(out_pat, ref_pat, atol=1e-4, rtol=1e-4))
    assert bool(jnp.allclose(out_proj, ref_proj, atol=1e-4, rtol=1e-4))

    print("KERNEL_OK")
</pallas_src>

<mosaic_0001>
module attributes {stable_mosaic.version = 11 : i64} {
  func.func @_code_update_kernel(%arg0: i32, %arg1: memref<3xi32, #tpu.memory_space<smem>>, %arg2: memref<1xi32, #tpu.memory_space<smem>>, %arg3: memref<16x32xf32, #tpu.memory_space<vmem>>, %arg4: memref<16x16xf32, #tpu.memory_space<vmem>>, %arg5: memref<16x32xf32, #tpu.memory_space<vmem>>, %arg6: memref<1x1x32xf32, #tpu.memory_space<vmem>>, %arg7: memref<3x1xf32, #tpu.memory_space<vmem>>, %arg8: memref<3x8xf32, #tpu.memory_space<vmem>>, %arg9: memref<32x32xf32, #tpu.memory_space<vmem>>, %arg10: memref<32x32xf32, #tpu.memory_space<vmem>>, %arg11: memref<32x32xf32, #tpu.memory_space<vmem>>, %arg12: memref<1x32xf32, #tpu.memory_space<vmem>>, %arg13: memref<8x32xf32, #tpu.memory_space<vmem>>, %arg14: memref<32x32xf32, #tpu.memory_space<vmem>>, %arg15: memref<1x32xf32, #tpu.memory_space<vmem>>, %arg16: memref<3x32xf32, #tpu.memory_space<vmem>>) attributes {dimension_semantics = [#tpu.dimension_semantics<arbitrary>], iteration_bounds = array<i64: 1>, scalar_prefetch = 2 : i64, scratch_operands = 0 : i64, tpu.core_type = #tpu.core_type<tc>, window_params = [{pipeline_mode = #tpu.pipeline_mode<synchronous>, transform_indices = @transform_0, window_bounds = array<i64: 16, 32>}, {pipeline_mode = #tpu.pipeline_mode<synchronous>, transform_indices = @transform_1, window_bounds = array<i64: 16, 16>}, {pipeline_mode = #tpu.pipeline_mode<synchronous>, transform_indices = @transform_2, window_bounds = array<i64: 16, 32>}, {transform_indices = @transform_3, window_bounds = array<i64: 1, 1, 32>}, {pipeline_mode = #tpu.pipeline_mode<synchronous>, transform_indices = @transform_4, window_bounds = array<i64: 3, 1>}, {pipeline_mode = #tpu.pipeline_mode<synchronous>, transform_indices = @transform_5, window_bounds = array<i64: 3, 8>}, {pipeline_mode = #tpu.pipeline_mode<synchronous>, transform_indices = @transform_6, window_bounds = array<i64: 32, 32>}, {pipeline_mode = #tpu.pipeline_mode<synchronous>, transform_indices = @transform_7, window_bounds = array<i64: 32, 32>}, {pipeline_mode = #tpu.pipeline_mode<synchronous>, transform_indices = @transform_8, window_bounds = array<i64: 32, 32>}, {pipeline_mode = #tpu.pipeline_mode<synchronous>, transform_indices = @transform_9, window_bounds = array<i64: 1, 32>}, {pipeline_mode = #tpu.pipeline_mode<synchronous>, transform_indices = @transform_10, window_bounds = array<i64: 8, 32>}, {pipeline_mode = #tpu.pipeline_mode<synchronous>, transform_indices = @transform_11, window_bounds = array<i64: 32, 32>}, {pipeline_mode = #tpu.pipeline_mode<synchronous>, transform_indices = @transform_12, window_bounds = array<i64: 1, 32>}, {pipeline_mode = #tpu.pipeline_mode<synchronous>, transform_indices = @transform_13, window_bounds = array<i64: 3, 32>}]} {
    %c0 = arith.constant 0 : index
    %c0_0 = arith.constant 0 : index
    %0 = vector.load %arg3[%c0, %c0_0] : memref<16x32xf32, #tpu.memory_space<vmem>>, vector<16x32xf32>
    %c0_1 = arith.constant 0 : index
    %c0_2 = arith.constant 0 : index
    %1 = vector.load %arg4[%c0_1, %c0_2] : memref<16x16xf32, #tpu.memory_space<vmem>>, vector<16x16xf32>
    %c0_3 = arith.constant 0 : index
    %c0_4 = arith.constant 0 : index
    %2 = vector.load %arg5[%c0_3, %c0_4] : memref<16x32xf32, #tpu.memory_space<vmem>>, vector<16x32xf32>
    %c0_5 = arith.constant 0 : index
    %c0_6 = arith.constant 0 : index
    %3 = vector.load %arg9[%c0_5, %c0_6] : memref<32x32xf32, #tpu.memory_space<vmem>>, vector<32x32xf32>
    %c0_7 = arith.constant 0 : index
    %c0_8 = arith.constant 0 : index
    %4 = vector.load %arg10[%c0_7, %c0_8] : memref<32x32xf32, #tpu.memory_space<vmem>>, vector<32x32xf32>
    %cst = arith.constant dense<0.000000e+00> : vector<16x32xf32>
    %5 = tpu.matmul %0, %3, %cst {dimension_numbers = #tpu.dot_dimension_numbers<[1], [0], [0], [1], [0, 0, 1, 1], [], []>} : vector<16x32xf32>, vector<32x32xf32>, vector<16x32xf32> -> vector<16x32xf32>
    %cst_9 = arith.constant dense<0.000000e+00> : vector<16x32xf32>
    %6 = tpu.matmul %1, %5, %cst_9 {dimension_numbers = #tpu.dot_dimension_numbers<[1], [0], [0], [1], [0, 0, 1, 1], [], []>} : vector<16x16xf32>, vector<16x32xf32>, vector<16x32xf32> -> vector<16x32xf32>
    %7 = arith.addf %6, %2 : vector<16x32xf32>
    %cst_10 = arith.constant 0.000000e+00 : f32
    %8 = vector.broadcast %cst_10 : f32 to vector<16x32xf32>
    %9 = arith.maximumf %7, %8 : vector<16x32xf32>
    %cst_11 = arith.constant dense<0.000000e+00> : vector<16x32xf32>
    %10 = tpu.matmul %9, %4, %cst_11 {dimension_numbers = #tpu.dot_dimension_numbers<[1], [0], [0], [1], [0, 0, 1, 1], [], []>} : vector<16x32xf32>, vector<32x32xf32>, vector<16x32xf32> -> vector<16x32xf32>
    %cst_12 = arith.constant dense<0.000000e+00> : vector<16x32xf32>
    %11 = tpu.matmul %1, %10, %cst_12 {dimension_numbers = #tpu.dot_dimension_numbers<[1], [0], [0], [1], [0, 0, 1, 1], [], []>} : vector<16x16xf32>, vector<16x32xf32>, vector<16x32xf32> -> vector<16x32xf32>
    %12 = arith.addf %11, %2 : vector<16x32xf32>
    %cst_13 = arith.constant 0.000000e+00 : f32
    %13 = vector.broadcast %cst_13 : f32 to vector<16x32xf32>
    %14 = arith.maximumf %12, %13 : vector<16x32xf32>
    %15 = tpu.iota {dimensions = array<i32: 1>} : vector<3x16xi32>
    %16 = tpu.iota {dimensions = array<i32: 0>} : vector<3x16xi32>
    %cst_14 = arith.constant 0.000000e+00 : f32
    %17 = vector.broadcast %cst_14 : f32 to vector<3x16xf32>
    %c0_i32 = arith.constant 0 : i32
    %18 = vector.broadcast %c0_i32 : i32 to vector<3x16xi32>
    %19 = arith.cmpi eq, %16, %18 : vector<3x16xi32>
    %c0_15 = arith.constant 0 : index
    %20 = memref.load %arg1[%c0_15] : memref<3xi32, #tpu.memory_space<smem>>
    %21 = vector.broadcast %20 : i32 to vector<3x16xi32>
    %22 = arith.cmpi eq, %15, %21 : vector<3x16xi32>
    %23 = arith.andi %19, %22 : vector<3x16xi1>
    %cst_16 = arith.constant 1.000000e+00 : f32
    %cst_17 = arith.constant 0.000000e+00 : f32
    %24 = vector.broadcast %cst_16 : f32 to vector<3x16xf32>
    %25 = vector.broadcast %cst_17 : f32 to vector<3x16xf32>
    %26 = arith.select %23, %24, %25 : vector<3x16xi1>, vector<3x16xf32>
    %27 = arith.addf %17, %26 : vector<3x16xf32>
    %c1_i32 = arith.constant 1 : i32
    %28 = vector.broadcast %c1_i32 : i32 to vector<3x16xi32>
    %29 = arith.cmpi eq, %16, %28 : vector<3x16xi32>
    %c1 = arith.constant 1 : index
    %30 = memref.load %arg1[%c1] : memref<3xi32, #tpu.memory_space<smem>>
    %31 = vector.broadcast %30 : i32 to vector<3x16xi32>
    %32 = arith.cmpi eq, %15, %31 : vector<3x16xi32>
    %33 = arith.andi %29, %32 : vector<3x16xi1>
    %cst_18 = arith.constant 1.000000e+00 : f32
    %cst_19 = arith.constant 0.000000e+00 : f32
    %34 = vector.broadcast %cst_18 : f32 to vector<3x16xf32>
    %35 = vector.broadcast %cst_19 : f32 to vector<3x16xf32>
    %36 = arith.select %33, %34, %35 : vector<3x16xi1>, vector<3x16xf32>
    %37 = arith.addf %27, %36 : vector<3x16xf32>
    %c2_i32 = arith.constant 2 : i32
    %38 = vector.broadcast %c2_i32 : i32 to vector<3x16xi32>
    %39 = arith.cmpi eq, %16, %38 : vector<3x16xi32>
    %c2 = arith.constant 2 : index
    %40 = memref.load %arg1[%c2] : memref<3xi32, #tpu.memory_space<smem>>
    %41 = vector.broadcast %40 : i32 to vector<3x16xi32>
    %42 = arith.cmpi eq, %15, %41 : vector<3x16xi32>
    %43 = arith.andi %39, %42 : vector<3x16xi1>
    %cst_20 = arith.constant 1.000000e+00 : f32
    %cst_21 = arith.constant 0.000000e+00 : f32
    %44 = vector.broadcast %cst_20 : f32 to vector<3x16xf32>
    %45 = vector.broadcast %cst_21 : f32 to vector<3x16xf32>
    %46 = arith.select %43, %44, %45 : vector<3x16xi1>, vector<3x16xf32>
    %47 = arith.addf %37, %46 : vector<3x16xf32>
    %cst_22 = arith.constant dense<0.000000e+00> : vector<3x32xf32>
    %48 = tpu.matmul %47, %14, %cst_22 {dimension_numbers = #tpu.dot_dimension_numbers<[1], [0], [0], [1], [0, 0, 1, 1], [], []>} : vector<3x16xf32>, vector<16x32xf32>, vector<3x32xf32> -> vector<3x32xf32>
    %c0_23 = arith.constant 0 : index
    %c0_24 = arith.constant 0 : index
    %c0_25 = arith.constant 0 : index
    %49 = vector.load %arg6[%c0_23, %c0_24, %c0_25] : memref<1x1x32xf32, #tpu.memory_space<vmem>>, vector<1x1x32xf32>
    %50 = vector.shape_cast %49 : vector<1x1x32xf32> to vector<1x32xf32>
    %c0_26 = arith.constant 0 : index
    %c0_27 = arith.constant 0 : index
    %51 = vector.load %arg7[%c0_26, %c0_27] : memref<3x1xf32, #tpu.memory_space<vmem>>, vector<3x1xf32>
    %c0_28 = arith.constant 0 : index
    %c0_29 = arith.constant 0 : index
    %52 = vector.load %arg12[%c0_28, %c0_29] : memref<1x32xf32, #tpu.memory_space<vmem>>, vector<1x32xf32>
    %c0_30 = arith.constant 0 : index
    %c0_31 = arith.constant 0 : index
    %53 = vector.load %arg8[%c0_30, %c0_31] : memref<3x8xf32, #tpu.memory_space<vmem>>, vector<3x8xf32>
    %c0_32 = arith.constant 0 : index
    %c0_33 = arith.constant 0 : index
    %54 = vector.load %arg13[%c0_32, %c0_33] : memref<8x32xf32, #tpu.memory_space<vmem>>, vector<8x32xf32>
    %c0_34 = arith.constant 0 : index
    %c0_35 = arith.constant 0 : index
    %55 = vector.load %arg11[%c0_34, %c0_35] : memref<32x32xf32, #tpu.memory_space<vmem>>, vector<32x32xf32>
    %c0_36 = arith.constant 0 : index
    %c0_37 = arith.constant 0 : index
    %56 = vector.load %arg14[%c0_36, %c0_37] : memref<32x32xf32, #tpu.memory_space<vmem>>, vector<32x32xf32>
    %c0_38 = arith.constant 0 : index
    %c0_39 = arith.constant 0 : index
    %57 = vector.load %arg15[%c0_38, %c0_39] : memref<1x32xf32, #tpu.memory_space<vmem>>, vector<1x32xf32>
    %cst_40 = arith.constant dense<0.000000e+00> : vector<1x32xf32>
    %58 = tpu.matmul %50, %55, %cst_40 {dimension_numbers = #tpu.dot_dimension_numbers<[1], [0], [0], [1], [0, 0, 1, 1], [], []>} : vector<1x32xf32>, vector<32x32xf32>, vector<1x32xf32> -> vector<1x32xf32>
    %59 = vector.broadcast %51 : vector<3x1xf32> to vector<3x32xf32>
    %60 = vector.broadcast %52 : vector<1x32xf32> to vector<3x32xf32>
    %61 = arith.mulf %59, %60 : vector<3x32xf32>
    %62 = vector.broadcast %58 : vector<1x32xf32> to vector<3x32xf32>
    %63 = arith.addf %62, %61 : vector<3x32xf32>
    %cst_41 = arith.constant dense<0.000000e+00> : vector<3x32xf32>
    %64 = tpu.matmul %53, %54, %cst_41 {dimension_numbers = #tpu.dot_dimension_numbers<[1], [0], [0], [1], [0, 0, 1, 1], [], []>} : vector<3x8xf32>, vector<8x32xf32>, vector<3x32xf32> -> vector<3x32xf32>
    %65 = arith.addf %63, %64 : vector<3x32xf32>
    %cst_42 = arith.constant dense<0.000000e+00> : vector<3x32xf32>
    %66 = tpu.matmul %48, %56, %cst_42 {dimension_numbers = #tpu.dot_dimension_numbers<[1], [0], [0], [1], [0, 0, 1, 1], [], []>} : vector<3x32xf32>, vector<32x32xf32>, vector<3x32xf32> -> vector<3x32xf32>
    %67 = arith.addf %65, %66 : vector<3x32xf32>
    %68 = vector.broadcast %57 : vector<1x32xf32> to vector<3x32xf32>
    %69 = arith.addf %67, %68 : vector<3x32xf32>
    %70 = math.tanh %69 : vector<3x32xf32>
    %71 = arith.mulf %70, %70 : vector<3x32xf32>
    %cst_43 = arith.constant dense<0.000000e+00> : vector<3xf32>
    %72 = vector.multi_reduction <add>, %71, %cst_43 [1] : vector<3x32xf32> to vector<3xf32>
    %73 = vector.shape_cast %72 : vector<3xf32> to vector<3x1xf32>
    %cst_44 = arith.constant 1.000000e-24 : f32
    %74 = vector.broadcast %cst_44 : f32 to vector<3x1xf32>
    %75 = arith.maximumf %73, %74 : vector<3x1xf32>
    %76 = math.rsqrt %75 : vector<3x1xf32>
    %77 = vector.broadcast %76 : vector<3x1xf32> to vector<3x32xf32>
    %78 = arith.mulf %70, %77 : vector<3x32xf32>
    %c0_45 = arith.constant 0 : index
    %c0_46 = arith.constant 0 : index
    %79 = vector.load %arg16[%c0_45, %c0_46] : memref<3x32xf32, #tpu.memory_space<vmem>>, vector<3x32xf32>
    tpu.vector_store %arg16[%c0_45, %c0_46], %78 {strides = array<i32>} : memref<3x32xf32, #tpu.memory_space<vmem>>, vector<3x32xf32>,
    return
  }
  func.func @transform_0(%arg0: i32, %arg1: memref<3xi32, #tpu.memory_space<smem>>, %arg2: memref<1xi32, #tpu.memory_space<smem>>) -> (i32, i32) {
    %c0_i32 = arith.constant 0 : i32
    %c0_i32_0 = arith.constant 0 : i32
    %c0_i32_1 = arith.constant 0 : i32
    return %c0_i32, %c0_i32_0 : i32, i32
  }
  func.func @transform_1(%arg0: i32, %arg1: memref<3xi32, #tpu.memory_space<smem>>, %arg2: memref<1xi32, #tpu.memory_space<smem>>) -> (i32, i32) {
    %c0_i32 = arith.constant 0 : i32
    %c0_i32_0 = arith.constant 0 : i32
    %c0_i32_1 = arith.constant 0 : i32
    return %c0_i32, %c0_i32_0 : i32, i32
  }
  func.func @transform_2(%arg0: i32, %arg1: memref<3xi32, #tpu.memory_space<smem>>, %arg2: memref<1xi32, #tpu.memory_space<smem>>) -> (i32, i32) {
    %c0_i32 = arith.constant 0 : i32
    %c0_i32_0 = arith.constant 0 : i32
    %c0_i32_1 = arith.constant 0 : i32
    return %c0_i32, %c0_i32_0 : i32, i32
  }
  func.func @transform_3(%arg0: i32, %arg1: memref<3xi32, #tpu.memory_space<smem>>, %arg2: memref<1xi32, #tpu.memory_space<smem>>) -> (i32, i32, i32) {
    %c0 = arith.constant 0 : index
    %0 = memref.load %arg2[%c0] : memref<1xi32, #tpu.memory_space<smem>>
    %c0_i32 = arith.constant 0 : i32
    %c0_i32_0 = arith.constant 0 : i32
    %c0_i32_1 = arith.constant 0 : i32
    return %0, %c0_i32, %c0_i32_0 : i32, i32, i32
  }
  func.func @transform_4(%arg0: i32, %arg1: memref<3xi32, #tpu.memory_space<smem>>, %arg2: memref<1xi32, #tpu.memory_space<smem>>) -> (i32, i32) {
    %c0_i32 = arith.constant 0 : i32
    %c0_i32_0 = arith.constant 0 : i32
    %c0_i32_1 = arith.constant 0 : i32
    return %c0_i32, %c0_i32_0 : i32, i32
  }
  func.func @transform_5(%arg0: i32, %arg1: memref<3xi32, #tpu.memory_space<smem>>, %arg2: memref<1xi32, #tpu.memory_space<smem>>) -> (i32, i32) {
    %c0_i32 = arith.constant 0 : i32
    %c0_i32_0 = arith.constant 0 : i32
    %c0_i32_1 = arith.constant 0 : i32
    return %c0_i32, %c0_i32_0 : i32, i32
  }
  func.func @transform_6(%arg0: i32, %arg1: memref<3xi32, #tpu.memory_space<smem>>, %arg2: memref<1xi32, #tpu.memory_space<smem>>) -> (i32, i32) {
    %c0_i32 = arith.constant 0 : i32
    %c0_i32_0 = arith.constant 0 : i32
    %c0_i32_1 = arith.constant 0 : i32
    return %c0_i32, %c0_i32_0 : i32, i32
  }
  func.func @transform_7(%arg0: i32, %arg1: memref<3xi32, #tpu.memory_space<smem>>, %arg2: memref<1xi32, #tpu.memory_space<smem>>) -> (i32, i32) {
    %c0_i32 = arith.constant 0 : i32
    %c0_i32_0 = arith.constant 0 : i32
    %c0_i32_1 = arith.constant 0 : i32
    return %c0_i32, %c0_i32_0 : i32, i32
  }
  func.func @transform_8(%arg0: i32, %arg1: memref<3xi32, #tpu.memory_space<smem>>, %arg2: memref<1xi32, #tpu.memory_space<smem>>) -> (i32, i32) {
    %c0_i32 = arith.constant 0 : i32
    %c0_i32_0 = arith.constant 0 : i32
    %c0_i32_1 = arith.constant 0 : i32
    return %c0_i32, %c0_i32_0 : i32, i32
  }
  func.func @transform_9(%arg0: i32, %arg1: memref<3xi32, #tpu.memory_space<smem>>, %arg2: memref<1xi32, #tpu.memory_space<smem>>) -> (i32, i32) {
    %c0_i32 = arith.constant 0 : i32
    %c0_i32_0 = arith.constant 0 : i32
    %c0_i32_1 = arith.constant 0 : i32
    return %c0_i32, %c0_i32_0 : i32, i32
  }
  func.func @transform_10(%arg0: i32, %arg1: memref<3xi32, #tpu.memory_space<smem>>, %arg2: memref<1xi32, #tpu.memory_space<smem>>) -> (i32, i32) {
    %c0_i32 = arith.constant 0 : i32
    %c0_i32_0 = arith.constant 0 : i32
    %c0_i32_1 = arith.constant 0 : i32
    return %c0_i32, %c0_i32_0 : i32, i32
  }
  func.func @transform_11(%arg0: i32, %arg1: memref<3xi32, #tpu.memory_space<smem>>, %arg2: memref<1xi32, #tpu.memory_space<smem>>) -> (i32, i32) {
    %c0_i32 = arith.constant 0 : i32
    %c0_i32_0 = arith.constant 0 : i32
    %c0_i32_1 = arith.constant 0 : i32
    return %c0_i32, %c0_i32_0 : i32, i32
  }
  func.func @transform_12(%arg0: i32, %arg1: memref<3xi32, #tpu.memory_space<smem>>, %arg2: memref<1xi32, #tpu.memory_space<smem>>) -> (i32, i32) {
    %c0_i32 = arith.constant 0 : i32
    %c0_i32_0 = arith.constant 0 : i32
    %c0_i32_1 = arith.constant 0 : i32
    return %c0_i32, %c0_i32_0 : i32, i32
  }
  func.func @transform_13(%arg0: i32, %arg1: memref<3xi32, #tpu.memory_space<smem>>, %arg2: memref<1xi32, #tpu.memory_space<smem>>) -> (i32, i32) {
    %c0_i32 = arith.constant 0 : i32
    %c0_i32_0 = arith.constant 0 : i32
    %c0_i32_1 = arith.constant 0 : i32
    return %c0_i32, %c0_i32_0 : i32, i32
  }
}

</mosaic_0001>

<llo_original>
// kernel: _code_update_fwd.1
$region0: #{_code_update_fwd.1}
  #allocation0 [shape = 'u32[]', space=smem, size = 0x4, offset = 0x4, fixed_abs, tag = 'smem constant byte address 0x4 - core index']
  #allocation1 [shape = 'u32[144,128]{1,0:T(1,128)}', space=vmem, size = 0x12000, scoped, tag = 'internal scratch']
  #allocation2 [shape = 's32[1]{0}', space=sflag, size = 0x4, scoped, tag = 'scoped memory for _code_update_fwd.1']
  #allocation3 [shape = 'u8[512]{0}', space=smem, size = 0x200, scoped, tag = 'prefetched SMEM operand 0']
  #allocation4 [shape = 's32[1]{0:T(128)S(6)}', space=smem, size = 0x200, scoped, tag = 'prefetched SMEM operand 1']
  %s0 = inlined_call_operand.vmem [shape: s32[3], index: 0, kind: input, shape index: {}]
  %s1 = inlined_call_operand.<no memory space> [shape: s32[1], index: 1, kind: input, shape index: {}]
  %s2 = inlined_call_operand.hbm [shape: f32[16,32], index: 2, kind: input, shape index: {}]
  %s3 = inlined_call_operand.vmem [shape: f32[16,16], index: 3, kind: input, shape index: {}]
  %s4 = inlined_call_operand.vmem [shape: f32[16,32], index: 4, kind: input, shape index: {}]
  %s5 = inlined_call_operand.hbm [shape: f32[8,1,32], index: 5, kind: input, shape index: {}]
  %s6 = inlined_call_operand.vmem [shape: f32[3,1], index: 6, kind: input, shape index: {}]
  %s7 = inlined_call_operand.vmem [shape: f32[3,8], index: 7, kind: input, shape index: {}]
  %s8 = inlined_call_operand.vmem [shape: f32[32,32], index: 8, kind: input, shape index: {}]
  %s9 = inlined_call_operand.vmem [shape: f32[32,32], index: 9, kind: input, shape index: {}]
  %s10 = inlined_call_operand.hbm [shape: f32[32,32], index: 10, kind: input, shape index: {}]
  %s11 = inlined_call_operand.hbm [shape: f32[1,32], index: 11, kind: input, shape index: {}]
  %s12 = inlined_call_operand.hbm [shape: f32[8,32], index: 12, kind: input, shape index: {}]
  %s13 = inlined_call_operand.vmem [shape: f32[32,32], index: 13, kind: input, shape index: {}]
  %s14 = inlined_call_operand.hbm [shape: f32[1,32], index: 14, kind: input, shape index: {}]
  %s15 = inlined_call_operand.hbm [shape: f32[3,32], index: 15, kind: output, shape index: {}]
  %s16 = sld [smem:[#allocation0]]
  $region86: #{_code_update_fwd.1} parent=0
    _
  %s18 = ssub.s32 1, %s16
  %s19 = scalar_select 0, %s18, %s16
  %s20 = sshll.u32 %s0, 4
  %s21 = int_to_ptr.vmem [resolvable:$true] %s20
  %23 = dma.vmem_to_smem %s21, 16, [#allocation3], [#allocation2]
  %24 = sst [smem:[#allocation4]] %s1
  %25 = dma.done [#allocation2], 16
  %26 = sfence
  $region1: #{_code_update_fwd.1} parent=0
    #allocation5 [shape = 'u8[8192]{0}', space=vmem, size = 0x2000, scoped, tag = 'input window, operand 2, single buffered']
    #allocation6 [shape = 's32[1]{0}', space=sflag, size = 0x4, scoped, tag = 'scoped memory for _code_update_fwd.1']
    #allocation7 [shape = 's32[1]{0}', space=sflag, size = 0x4, scoped, tag = 'scoped memory for _code_update_fwd.1']
    #allocation8 [shape = 'u8[512]{0}', space=vmem, size = 0x400, scoped, tag = 'input window, operand 5, single buffered']
    #allocation9 [shape = 's32[1]{0}', space=sflag, size = 0x4, scoped, tag = 'scoped memory for _code_update_fwd.1']
    #allocation10 [shape = 'u8[16384]{0}', space=vmem, size = 0x4000, scoped, tag = 'input window, operand 10, single buffered']
    #allocation11 [shape = 'u8[512]{0}', space=vmem, size = 0x400, scoped, tag = 'input window, operand 11, single buffered']
    #allocation12 [shape = 's32[1]{0}', space=sflag, size = 0x4, scoped, tag = 'scoped memory for _code_update_fwd.1']
    #allocation13 [shape = 'u8[4096]{0}', space=vmem, size = 0x1000, scoped, tag = 'input window, operand 12, single buffered']
    #allocation14 [shape = 'u8[512]{0}', space=vmem, size = 0x400, scoped, tag = 'input window, operand 14, single buffered']
    #allocation15 [shape = 's32[1]{0}', space=sflag, size = 0x4, scoped, tag = 'scoped memory for _code_update_fwd.1']
    #allocation16 [shape = 'u8[2048]{0}', space=vmem, size = 0x800, scoped, tag = 'output window, operand 0, single buffered']
    %27 = vsyncpa [#allocation6], 0
    %28 = vsyncpa [#allocation9], 0
    %29 = vsyncpa [#allocation12], 0
    %30 = vsyncpa [#allocation15], 0
    %31 = vsyncpa [#allocation7], 0
    // Predicated region
    $region2: #{_code_update_fwd.1} parent=1 // pred_check
      _
    $region3: #{_code_update_fwd.1} parent=1 // pred_check_branch
      %33 = sbr.rel (0) target = $region5
    $region4: #{_code_update_fwd.1} parent=1 // pred_region
      %s35 = ssub.s32 256, 256
      %36 = vsyncadd [#allocation6], %s35
      %s37 = sshll.u32 [#allocation5], 4
      %s38 = int_to_ptr.vmem [resolvable:$true] %s37
      %43 = dma.hbm_to_vmem [thread:$0]  %s2, 256, %s38, [#allocation6], 128, 128, 8
    $region5: #{_code_update_fwd.1} parent=1 // pred_fallthru
      _
    // Predicated region
    $region6: #{_code_update_fwd.1} parent=1 // pred_check
      _
    $region7: #{_code_update_fwd.1} parent=1 // pred_check_branch
      %45 = sbr.rel (0) target = $region9
    $region8: #{_code_update_fwd.1} parent=1 // pred_region
      _
    $region9: #{_code_update_fwd.1} parent=1 // pred_fallthru
      _
    // Predicated region
    $region10: #{_code_update_fwd.1} parent=1 // pred_check
      _
    $region11: #{_code_update_fwd.1} parent=1 // pred_check_branch
      %47 = sbr.rel (0) target = $region13
    $region12: #{_code_update_fwd.1} parent=1 // pred_region
      _
    $region13: #{_code_update_fwd.1} parent=1 // pred_fallthru
      _
    // Predicated region
    $region14: #{_code_update_fwd.1} parent=1 // pred_check
      _
    $region15: #{_code_update_fwd.1} parent=1 // pred_check_branch
      %49 = sbr.rel (0) target = $region17
    $region16: #{_code_update_fwd.1} parent=1 // pred_region
      %s50 = sld [smem:[#allocation4]]
      %s52 = ssub.s32 16, 16
      %53 = vsyncadd [#allocation9], %s52
      %s54 = smul.addr %s50, 16
      %s55 = scalar_lea.hbm %s5, %s54
      %s57 = sshll.u32 [#allocation8], 4
      %s58 = int_to_ptr.vmem [resolvable:$true] %s57
      %60 = dma.hbm_to_vmem [thread:$0]  %s55, 16, %s58, [#allocation9]
    $region17: #{_code_update_fwd.1} parent=1 // pred_fallthru
      _
    // Predicated region
    $region18: #{_code_update_fwd.1} parent=1 // pred_check
      _
    $region19: #{_code_update_fwd.1} parent=1 // pred_check_branch
      %62 = sbr.rel (0) target = $region21
    $region20: #{_code_update_fwd.1} parent=1 // pred_region
      _
    $region21: #{_code_update_fwd.1} parent=1 // pred_fallthru
      _
    // Predicated region
    $region22: #{_code_update_fwd.1} parent=1 // pred_check
      _
    $region23: #{_code_update_fwd.1} parent=1 // pred_check_branch
      %64 = sbr.rel (0) target = $region25
    $region24: #{_code_update_fwd.1} parent=1 // pred_region
      _
    $region25: #{_code_update_fwd.1} parent=1 // pred_fallthru
      _
    // Predicated region
    $region26: #{_code_update_fwd.1} parent=1 // pred_check
      _
    $region27: #{_code_update_fwd.1} parent=1 // pred_check_branch
      %66 = sbr.rel (0) target = $region29
    $region28: #{_code_update_fwd.1} parent=1 // pred_region
      _
    $region29: #{_code_update_fwd.1} parent=1 // pred_fallthru
      _
    // Predicated region
    $region30: #{_code_update_fwd.1} parent=1 // pred_check
      _
    $region31: #{_code_update_fwd.1} parent=1 // pred_check_branch
      %68 = sbr.rel (0) target = $region33
    $region32: #{_code_update_fwd.1} parent=1 // pred_region
      _
    $region33: #{_code_update_fwd.1} parent=1 // pred_fallthru
      _
    // Predicated region
    $region34: #{_code_update_fwd.1} parent=1 // pred_check
      _
    $region35: #{_code_update_fwd.1} parent=1 // pred_check_branch
      %70 = sbr.rel (0) target = $region37
    $region36: #{_code_update_fwd.1} parent=1 // pred_region
      %s72 = ssub.s32 512, 512
      %73 = vsyncadd [#allocation9], %s72
      %s74 = sshll.u32 [#allocation10], 4
      %s75 = int_to_ptr.vmem [resolvable:$true] %s74
      %80 = dma.hbm_to_vmem [thread:$0]  %s10, 512, %s75, [#allocation9], 128, 128, 8
    $region37: #{_code_update_fwd.1} parent=1 // pred_fallthru
      _
    // Predicated region
    $region38: #{_code_update_fwd.1} parent=1 // pred_check
      _
    $region39: #{_code_update_fwd.1} parent=1 // pred_check_branch
      %82 = sbr.rel (0) target = $region41
    $region40: #{_code_update_fwd.1} parent=1 // pred_region
      %s84 = ssub.s32 16, 16
      %85 = vsyncadd [#allocation12], %s84
      %s87 = sshll.u32 [#allocation11], 4
      %s88 = int_to_ptr.vmem [resolvable:$true] %s87
      %90 = dma.hbm_to_vmem [thread:$0]  %s11, 16, %s88, [#allocation12]
    $region41: #{_code_update_fwd.1} parent=1 // pred_fallthru
      _
    // Predicated region
    $region42: #{_code_update_fwd.1} parent=1 // pred_check
      _
    $region43: #{_code_update_fwd.1} parent=1 // pred_check_branch
      %92 = sbr.rel (0) target = $region45
    $region44: #{_code_update_fwd.1} parent=1 // pred_region
      %s94 = ssub.s32 128, 128
      %95 = vsyncadd [#allocation12], %s94
      %s97 = sshll.u32 [#allocation13], 4
      %s98 = int_to_ptr.vmem [resolvable:$true] %s97
      %100 = dma.hbm_to_vmem [thread:$0]  %s12, 128, %s98, [#allocation12]
    $region45: #{_code_update_fwd.1} parent=1 // pred_fallthru
      _
    // Predicated region
    $region46: #{_code_update_fwd.1} parent=1 // pred_check
      _
    $region47: #{_code_update_fwd.1} parent=1 // pred_check_branch
      %102 = sbr.rel (0) target = $region49
    $region48: #{_code_update_fwd.1} parent=1 // pred_region
      _
    $region49: #{_code_update_fwd.1} parent=1 // pred_fallthru
      _
    // Predicated region
    $region50: #{_code_update_fwd.1} parent=1 // pred_check
      _
    $region51: #{_code_update_fwd.1} parent=1 // pred_check_branch
      %104 = sbr.rel (0) target = $region53
    $region52: #{_code_update_fwd.1} parent=1 // pred_region
      %s106 = ssub.s32 16, 16
      %107 = vsyncadd [#allocation15], %s106
      %s109 = sshll.u32 [#allocation14], 4
      %s110 = int_to_ptr.vmem [resolvable:$true] %s109
      %112 = dma.hbm_to_vmem [thread:$0]  %s14, 16, %s110, [#allocation15]
    $region53: #{_code_update_fwd.1} parent=1 // pred_fallthru
      _
    // Predicated region
    $region54: #{_code_update_fwd.1} parent=1 // pred_check
      _
    $region55: #{_code_update_fwd.1} parent=1 // pred_check_branch
      %114 = sbr.rel (0) target = $region57
    $region56: #{_code_update_fwd.1} parent=1 // pred_region
      %115 = dma.done [#allocation6], 256
    $region57: #{_code_update_fwd.1} parent=1 // pred_fallthru
      _
    // Predicated region
    $region58: #{_code_update_fwd.1} parent=1 // pred_check
      _
    $region59: #{_code_update_fwd.1} parent=1 // pred_check_branch
      %117 = sbr.rel (0) target = $region61
    $region60: #{_code_update_fwd.1} parent=1 // pred_region
      %118 = dma.done [#allocation9], 16
    $region61: #{_code_update_fwd.1} parent=1 // pred_fallthru
      _
    // Predicated region
    $region62: #{_code_update_fwd.1} parent=1 // pred_check
      _
    $region63: #{_code_update_fwd.1} parent=1 // pred_check_branch
      %120 = sbr.rel (0) target = $region65
    $region64: #{_code_update_fwd.1} parent=1 // pred_region
      %121 = dma.done [#allocation9], 512
    $region65: #{_code_update_fwd.1} parent=1 // pred_fallthru
      _
    // Predicated region
    $region66: #{_code_update_fwd.1} parent=1 // pred_check
      _
    $region67: #{_code_update_fwd.1} parent=1 // pred_check_branch
      %123 = sbr.rel (0) target = $region69
    $region68: #{_code_update_fwd.1} parent=1 // pred_region
      %124 = dma.done [#allocation12], 16
    $region69: #{_code_update_fwd.1} parent=1 // pred_fallthru
      _
    // Predicated region
    $region70: #{_code_update_fwd.1} parent=1 // pred_check
      _
    $region71: #{_code_update_fwd.1} parent=1 // pred_check_branch
      %126 = sbr.rel (0) target = $region73
    $region72: #{_code_update_fwd.1} parent=1 // pred_region
      %127 = dma.done [#allocation12], 128
    $region73: #{_code_update_fwd.1} parent=1 // pred_fallthru
      _
    // Predicated region
    $region74: #{_code_update_fwd.1} parent=1 // pred_check
      _
    $region75: #{_code_update_fwd.1} parent=1 // pred_check_branch
      %129 = sbr.rel (0) target = $region77
    $region76: #{_code_update_fwd.1} parent=1 // pred_region
      %130 = dma.done [#allocation15], 16
    $region77: #{_code_update_fwd.1} parent=1 // pred_fallthru
      _
    %s131 = sld [smem:[#allocation4]]
    %v132 = vld [vmem:[#allocation5] sm:$0xff]
    %v133 = vld [vmem:[#allocation5 + $0x8] sm:$0xff]
    %v134 = vld [vmem:[%s3] sm:$0xff]
    %v135 = vld [vmem:[%s3 + $0x8] sm:$0xff]
    %v136 = vld [vmem:[%s4] sm:$0xff]
    %v137 = vld [vmem:[%s4 + $0x8] sm:$0xff]
    %v138 = vld [vmem:[%s8] sm:$0xff]
    %v139 = vld [vmem:[%s8 + $0x8] sm:$0xff]
    %v140 = vld [vmem:[%s8 + $0x10] sm:$0xff]
    %v141 = vld [vmem:[%s8 + $0x18] sm:$0xff]
    %v142 = vld [vmem:[%s9] sm:$0xff]
    %v143 = vld [vmem:[%s9 + $0x8] sm:$0xff]
    %v144 = vld [vmem:[%s9 + $0x10] sm:$0xff]
    %v145 = vld [vmem:[%s9 + $0x18] sm:$0xff]
    %vm146 = vcmask 261120
    %v148 = vsel %vm146, %v132, 0
    %v151 = vsel %vm146, %v133, 0
    %153 = vmatprep.subr.mxu0 0.0
    %154 = vmatpush1.msra.mxu0 %v138
    %155 = vmatprep.subr.mxu0 0.0
    %156 = vmatpush1.msra.mxu0 %v139
    %157 = vmatprep.subr.mxu0 0.0
    %158 = vmatpush1.msra.mxu0 %v140
    %159 = vmatprep.subr.mxu0 0.0
    %160 = vmatpush1.msra.mxu0 %v141
    %161 = vmatprep.subr.mxu0 0.0
    %162 = vmatpush1.msra.mxu0 0.0
    %163 = vmatprep.subr.mxu0 0.0
    %164 = vmatpush1.msra.mxu0 0.0
    %165 = vmatprep.subr.mxu0 0.0
    %166 = vmatpush1.msra.mxu0 0.0
    %167 = vmatprep.subr.mxu0 0.0
    %168 = vmatpush1.msra.mxu0 0.0
    %169 = vmatprep.subr.mxu0 0.0
    %170 = vmatpush1.msra.mxu0 0.0
    %171 = vmatprep.subr.mxu0 0.0
    %172 = vmatpush1.msra.mxu0 0.0
    %173 = vmatprep.subr.mxu0 0.0
    %174 = vmatpush1.msra.mxu0 0.0
    %175 = vmatprep.subr.mxu0 0.0
    %176 = vmatpush1.msra.mxu0 0.0
    %177 = vmatprep.subr.mxu0 0.0
    %178 = vmatpush1.msra.mxu0 0.0
    %179 = vmatprep.subr.mxu0 0.0
    %180 = vmatpush1.msra.mxu0 0.0
    %181 = vmatprep.subr.mxu0 0.0
    %182 = vmatpush1.msra.mxu0 0.0
    %183 = vmatprep.subr.mxu0 0.0
    %184 = vmatpush1.msra.mxu0 0.0
    %185 = vmatprep.subr.mxu0 0.0
    %186 = vmatpush1.msra.mxu0 0.0
    %187 = vmatprep.subr.mxu0 0.0
    %188 = vmatpush1.msra.mxu0 0.0
    %189 = vmatprep.subr.mxu0 0.0
    %190 = vmatpush1.msra.mxu0 0.0
    %191 = vmatprep.subr.mxu0 0.0
    %192 = vmatpush1.msra.mxu0 0.0
    %193 = vmatprep.subr.mxu0 0.0
    %194 = vmatpush1.msra.mxu0 0.0
    %195 = vmatprep.subr.mxu0 0.0
    %196 = vmatpush1.msra.mxu0 0.0
    %197 = vmatprep.subr.mxu0 0.0
    %198 = vmatpush1.msra.mxu0 0.0
    %199 = vmatprep.subr.mxu0 0.0
    %200 = vmatpush1.msra.mxu0 0.0
    %201 = vmatprep.subr.mxu0 0.0
    %202 = vmatpush1.msra.mxu0 0.0
    %203 = vmatprep.subr.mxu0 0.0
    %204 = vmatpush1.msra.mxu0 0.0
    %205 = vmatprep.subr.mxu0 0.0
    %206 = vmatpush1.msra.mxu0 0.0
    %207 = vmatprep.subr.mxu0 0.0
    %208 = vmatpush1.msra.mxu0 0.0
    %209 = vmatprep.subr.mxu0 0.0
    %210 = vmatpush1.msra.mxu0 0.0
    %211 = vmatprep.subr.mxu0 0.0
    %212 = vmatpush1.msra.mxu0 0.0
    %213 = vmatprep.subr.mxu0 0.0
    %214 = vmatpush1.msra.mxu0 0.0
    %215 = vmatprep.subr.mxu0 0.0
    %216 = vmatpush1.msra.mxu0 0.0
    %217 = vmatprep.mubr.f32.mxu0 0.0
    %218 = vmatmul.mubr.f32.gmra.mrb[0].mxu0 %v148
    %v219 = vpop.f32.mrb[0].mxu0
    %v220 = vadd.f32 0.0, %v219
    %v221 = vpop.f32.mrb[0].mxu0
    %222 = vmatprep.mubr.f32.mxu0 0.0
    %223 = vmatmul.mubr.f32.gmra.mrb[0].mxu0 %v151
    %v224 = vpop.f32.mrb[0].mxu0
    %v225 = vadd.f32 0.0, %v224
    %v226 = vpop.f32.mrb[0].mxu0
    %227 = vdwg.mxu0
    %vm228 = vcmask 130048
    %v230 = vsel %vm228, %v134, 0
    %v233 = vsel %vm228, %v135, 0
    %235 = vmatprep.subr.mxu0 0.0
    %236 = vmatpush1.msra.mxu0 %v220
    %237 = vmatprep.subr.mxu0 0.0
    %238 = vmatpush1.msra.mxu0 %v225
    %239 = vmatprep.subr.mxu0 0.0
    %240 = vmatpush1.msra.mxu0 0.0
    %241 = vmatprep.subr.mxu0 0.0
    %242 = vmatpush1.msra.mxu0 0.0
    %243 = vmatprep.subr.mxu0 0.0
    %244 = vmatpush1.msra.mxu0 0.0
    %245 = vmatprep.subr.mxu0 0.0
    %246 = vmatpush1.msra.mxu0 0.0
    %247 = vmatprep.subr.mxu0 0.0
    %248 = vmatpush1.msra.mxu0 0.0
    %249 = vmatprep.subr.mxu0 0.0
    %250 = vmatpush1.msra.mxu0 0.0
    %251 = vmatprep.subr.mxu0 0.0
    %252 = vmatpush1.msra.mxu0 0.0
    %253 = vmatprep.subr.mxu0 0.0
    %254 = vmatpush1.msra.mxu0 0.0
    %255 = vmatprep.subr.mxu0 0.0
    %256 = vmatpush1.msra.mxu0 0.0
    %257 = vmatprep.subr.mxu0 0.0
    %258 = vmatpush1.msra.mxu0 0.0
    %259 = vmatprep.subr.mxu0 0.0
    %260 = vmatpush1.msra.mxu0 0.0
    %261 = vmatprep.subr.mxu0 0.0
    %262 = vmatpush1.msra.mxu0 0.0
    %263 = vmatprep.subr.mxu0 0.0
    %264 = vmatpush1.msra.mxu0 0.0
    %265 = vmatprep.subr.mxu0 0.0
    %266 = vmatpush1.msra.mxu0 0.0
    %267 = vmatprep.subr.mxu0 0.0
    %268 = vmatpush1.msra.mxu0 0.0
    %269 = vmatprep.subr.mxu0 0.0
    %270 = vmatpush1.msra.mxu0 0.0
    %271 = vmatprep.subr.mxu0 0.0
    %272 = vmatpush1.msra.mxu0 0.0
    %273 = vmatprep.subr.mxu0 0.0
    %274 = vmatpush1.msra.mxu0 0.0
    %275 = vmatprep.subr.mxu0 0.0
    %276 = vmatpush1.msra.mxu0 0.0
    %277 = vmatprep.subr.mxu0 0.0
    %278 = vmatpush1.msra.mxu0 0.0
    %279 = vmatprep.subr.mxu0 0.0
    %280 = vmatpush1.msra.mxu0 0.0
    %281 = vmatprep.subr.mxu0 0.0
    %282 = vmatpush1.msra.mxu0 0.0
    %283 = vmatprep.subr.mxu0 0.0
    %284 = vmatpush1.msra.mxu0 0.0
    %285 = vmatprep.subr.mxu0 0.0
    %286 = vmatpush1.msra.mxu0 0.0
    %287 = vmatprep.subr.mxu0 0.0
    %288 = vmatpush1.msra.mxu0 0.0
    %289 = vmatprep.subr.mxu0 0.0
    %290 = vmatpush1.msra.mxu0 0.0
    %291 = vmatprep.subr.mxu0 0.0
    %292 = vmatpush1.msra.mxu0 0.0
    %293 = vmatprep.subr.mxu0 0.0
    %294 = vmatpush1.msra.mxu0 0.0
    %295 = vmatprep.subr.mxu0 0.0
    %296 = vmatpush1.msra.mxu0 0.0
    %297 = vmatprep.subr.mxu0 0.0
    %298 = vmatpush1.msra.mxu0 0.0
    %299 = vmatprep.mubr.f32.mxu0 0.0
    %300 = vmatmul.mubr.f32.gmra.mrb[0].mxu0 %v230
    %v301 = vpop.f32.mrb[0].mxu0
    %v302 = vadd.f32 %v136, %v301
    %v303 = vpop.f32.mrb[0].mxu0
    %304 = vmatprep.mubr.f32.mxu0 0.0
    %305 = vmatmul.mubr.f32.gmra.mrb[0].mxu0 %v233
    %v306 = vpop.f32.mrb[0].mxu0
    %v307 = vadd.f32 %v137, %v306
    %v308 = vpop.f32.mrb[0].mxu0
    %309 = vdwg.mxu0
    %v310 = vmax.f32 %v302, 0.0
    %v311 = vmax.f32 %v307, 0.0
    %v313 = vsel %vm146, %v310, 0
    %v316 = vsel %vm146, %v311, 0
    %318 = vmatprep.subr.mxu0 0.0
    %319 = vmatpush1.msra.mxu0 %v142
    %320 = vmatprep.subr.mxu0 0.0
    %321 = vmatpush1.msra.mxu0 %v143
    %322 = vmatprep.subr.mxu0 0.0
    %323 = vmatpush1.msra.mxu0 %v144
    %324 = vmatprep.subr.mxu0 0.0
    %325 = vmatpush1.msra.mxu0 %v145
    %326 = vmatprep.subr.mxu0 0.0
    %327 = vmatpush1.msra.mxu0 0.0
    %328 = vmatprep.subr.mxu0 0.0
    %329 = vmatpush1.msra.mxu0 0.0
    %330 = vmatprep.subr.mxu0 0.0
    %331 = vmatpush1.msra.mxu0 0.0
    %332 = vmatprep.subr.mxu0 0.0
    %333 = vmatpush1.msra.mxu0 0.0
    %334 = vmatprep.subr.mxu0 0.0
    %335 = vmatpush1.msra.mxu0 0.0
    %336 = vmatprep.subr.mxu0 0.0
    %337 = vmatpush1.msra.mxu0 0.0
    %338 = vmatprep.subr.mxu0 0.0
    %339 = vmatpush1.msra.mxu0 0.0
    %340 = vmatprep.subr.mxu0 0.0
    %341 = vmatpush1.msra.mxu0 0.0
    %342 = vmatprep.subr.mxu0 0.0
    %343 = vmatpush1.msra.mxu0 0.0
    %344 = vmatprep.subr.mxu0 0.0
    %345 = vmatpush1.msra.mxu0 0.0
    %346 = vmatprep.subr.mxu0 0.0
    %347 = vmatpush1.msra.mxu0 0.0
    %348 = vmatprep.subr.mxu0 0.0
    %349 = vmatpush1.msra.mxu0 0.0
    %350 = vmatprep.subr.mxu0 0.0
    %351 = vmatpush1.msra.mxu0 0.0
    %352 = vmatprep.subr.mxu0 0.0
    %353 = vmatpush1.msra.mxu0 0.0
    %354 = vmatprep.subr.mxu0 0.0
    %355 = vmatpush1.msra.mxu0 0.0
    %356 = vmatprep.subr.mxu0 0.0
    %357 = vmatpush1.msra.mxu0 0.0
    %358 = vmatprep.subr.mxu0 0.0
    %359 = vmatpush1.msra.mxu0 0.0
    %360 = vmatprep.subr.mxu0 0.0
    %361 = vmatpush1.msra.mxu0 0.0
    %362 = vmatprep.subr.mxu0 0.0
    %363 = vmatpush1.msra.mxu0 0.0
    %364 = vmatprep.subr.mxu0 0.0
    %365 = vmatpush1.msra.mxu0 0.0
    %366 = vmatprep.subr.mxu0 0.0
    %367 = vmatpush1.msra.mxu0 0.0
    %368 = vmatprep.subr.mxu0 0.0
    %369 = vmatpush1.msra.mxu0 0.0
    %370 = vmatprep.subr.mxu0 0.0
    %371 = vmatpush1.msra.mxu0 0.0
    %372 = vmatprep.subr.mxu0 0.0
    %373 = vmatpush1.msra.mxu0 0.0
    %374 = vmatprep.subr.mxu0 0.0
    %375 = vmatpush1.msra.mxu0 0.0
    %376 = vmatprep.subr.mxu0 0.0
    %377 = vmatpush1.msra.mxu0 0.0
    %378 = vmatprep.subr.mxu0 0.0
    %379 = vmatpush1.msra.mxu0 0.0
    %380 = vmatprep.subr.mxu0 0.0
    %381 = vmatpush1.msra.mxu0 0.0
    %382 = vmatprep.mubr.f32.mxu0 0.0
    %383 = vmatmul.mubr.f32.gmra.mrb[0].mxu0 %v313
    %v384 = vpop.f32.mrb[0].mxu0
    %v385 = vadd.f32 0.0, %v384
    %v386 = vpop.f32.mrb[0].mxu0
    %387 = vmatprep.mubr.f32.mxu0 0.0
    %388 = vmatmul.mubr.f32.gmra.mrb[0].mxu0 %v316
    %v389 = vpop.f32.mrb[0].mxu0
    %v390 = vadd.f32 0.0, %v389
    %v391 = vpop.f32.mrb[0].mxu0
    %392 = vdwg.mxu0
    %393 = vmatprep.subr.mxu0 0.0
    %394 = vmatpush1.msra.mxu0 %v385
    %395 = vmatprep.subr.mxu0 0.0
    %396 = vmatpush1.msra.mxu0 %v390
    %397 = vmatprep.subr.mxu0 0.0
    %398 = vmatpush1.msra.mxu0 0.0
    %399 = vmatprep.subr.mxu0 0.0
    %400 = vmatpush1.msra.mxu0 0.0
    %401 = vmatprep.subr.mxu0 0.0
    %402 = vmatpush1.msra.mxu0 0.0
    %403 = vmatprep.subr.mxu0 0.0
    %404 = vmatpush1.msra.mxu0 0.0
    %405 = vmatprep.subr.mxu0 0.0
    %406 = vmatpush1.msra.mxu0 0.0
    %407 = vmatprep.subr.mxu0 0.0
    %408 = vmatpush1.msra.mxu0 0.0
    %409 = vmatprep.subr.mxu0 0.0
    %410 = vmatpush1.msra.mxu0 0.0
    %411 = vmatprep.subr.mxu0 0.0
    %412 = vmatpush1.msra.mxu0 0.0
    %413 = vmatprep.subr.mxu0 0.0
    %414 = vmatpush1.msra.mxu0 0.0
    %415 = vmatprep.subr.mxu0 0.0
    %416 = vmatpush1.msra.mxu0 0.0
    %417 = vmatprep.subr.mxu0 0.0
    %418 = vmatpush1.msra.mxu0 0.0
    %419 = vmatprep.subr.mxu0 0.0
    %420 = vmatpush1.msra.mxu0 0.0
    %421 = vmatprep.subr.mxu0 0.0
    %422 = vmatpush1.msra.mxu0 0.0
    %423 = vmatprep.subr.mxu0 0.0
    %424 = vmatpush1.msra.mxu0 0.0
    %425 = vmatprep.subr.mxu0 0.0
    %426 = vmatpush1.msra.mxu0 0.0
    %427 = vmatprep.subr.mxu0 0.0
    %428 = vmatpush1.msra.mxu0 0.0
    %429 = vmatprep.subr.mxu0 0.0
    %430 = vmatpush1.msra.mxu0 0.0
    %431 = vmatprep.subr.mxu0 0.0
    %432 = vmatpush1.msra.mxu0 0.0
    %433 = vmatprep.subr.mxu0 0.0
    %434 = vmatpush1.msra.mxu0 0.0
    %435 = vmatprep.subr.mxu0 0.0
    %436 = vmatpush1.msra.mxu0 0.0
    %437 = vmatprep.subr.mxu0 0.0
    %438 = vmatpush1.msra.mxu0 0.0
    %439 = vmatprep.subr.mxu0 0.0
    %440 = vmatpush1.msra.mxu0 0.0
    %441 = vmatprep.subr.mxu0 0.0
    %442 = vmatpush1.msra.mxu0 0.0
    %443 = vmatprep.subr.mxu0 0.0
    %444 = vmatpush1.msra.mxu0 0.0
    %445 = vmatprep.subr.mxu0 0.0
    %446 = vmatpush1.msra.mxu0 0.0
    %447 = vmatprep.subr.mxu0 0.0
    %448 = vmatpush1.msra.mxu0 0.0
    %449 = vmatprep.subr.mxu0 0.0
    %450 = vmatpush1.msra.mxu0 0.0
    %451 = vmatprep.subr.mxu0 0.0
    %452 = vmatpush1.msra.mxu0 0.0
    %453 = vmatprep.subr.mxu0 0.0
    %454 = vmatpush1.msra.mxu0 0.0
    %455 = vmatprep.subr.mxu0 0.0
    %456 = vmatpush1.msra.mxu0 0.0
    %457 = vmatprep.mubr.f32.mxu0 0.0
    %458 = vmatmul.mubr.f32.gmra.mrb[0].mxu0 %v230
    %v459 = vpop.f32.mrb[0].mxu0
    %v460 = vadd.f32 %v136, %v459
    %v461 = vpop.f32.mrb[0].mxu0
    %462 = vmatprep.mubr.f32.mxu0 0.0
    %463 = vmatmul.mubr.f32.gmra.mrb[0].mxu0 %v233
    %v464 = vpop.f32.mrb[0].mxu0
    %v465 = vadd.f32 %v137, %v464
    %v466 = vpop.f32.mrb[0].mxu0
    %467 = vdwg.mxu0
    %v468 = vmax.f32 %v460, 0.0
    %v469 = vmax.f32 %v465, 0.0
    %v470 = vlaneseq
    %v471 = vand.u32 %v470, 127
    %v472 = vlaneseq
    %v473 = vshrl.u32 %v472, 7
    %vm474 = vcmp.eq.s32.totalorder %v473, 0
    %s475 = sld [smem:[#allocation3]]
    %v476 = vstv %s475
    %vm477 = vcmp.eq.s32.totalorder %v471, %v476
    %vm478 = vmand %vm474, %vm477
    %v479 = vsel %vm478, 1.0, 0.0
    %v480 = vadd.f32 %v479, 0.0
    %vm481 = vcmp.eq.s32.totalorder %v473, 1
    %s482 = sld [smem:[#allocation3 + $0x1]]
    %v483 = vstv %s482
    %vm484 = vcmp.eq.s32.totalorder %v471, %v483
    %vm485 = vmand %vm481, %vm484
    %v486 = vsel %vm485, 1.0, 0.0
    %v487 = vadd.f32 %v480, %v486
    %vm488 = vcmp.eq.s32.totalorder %v473, 2
    %s489 = sld [smem:[#allocation3 + $0x2]]
    %v490 = vstv %s489
    %vm491 = vcmp.eq.s32.totalorder %v471, %v490
    %vm492 = vmand %vm488, %vm491
    %v493 = vsel %vm492, 1.0, 0.0
    %v494 = vadd.f32 %v487, %v493
    %v496 = vsel %vm228, %v494, 0
    %498 = vmatprep.subr.mxu0 0.0
    %499 = vmatpush1.msra.mxu0 %v468
    %500 = vmatprep.subr.mxu0 0.0
    %501 = vmatpush1.msra.mxu0 %v469
    %502 = vmatprep.subr.mxu0 0.0
    %503 = vmatpush1.msra.mxu0 0.0
    %504 = vmatprep.subr.mxu0 0.0
    %505 = vmatpush1.msra.mxu0 0.0
    %506 = vmatprep.subr.mxu0 0.0
    %507 = vmatpush1.msra.mxu0 0.0
    %508 = vmatprep.subr.mxu0 0.0
    %509 = vmatpush1.msra.mxu0 0.0
    %510 = vmatprep.subr.mxu0 0.0
    %511 = vmatpush1.msra.mxu0 0.0
    %512 = vmatprep.subr.mxu0 0.0
    %513 = vmatpush1.msra.mxu0 0.0
    %514 = vmatprep.subr.mxu0 0.0
    %515 = vmatpush1.msra.mxu0 0.0
    %516 = vmatprep.subr.mxu0 0.0
    %517 = vmatpush1.msra.mxu0 0.0
    %518 = vmatprep.subr.mxu0 0.0
    %519 = vmatpush1.msra.mxu0 0.0
    %520 = vmatprep.subr.mxu0 0.0
    %521 = vmatpush1.msra.mxu0 0.0
    %522 = vmatprep.subr.mxu0 0.0
    %523 = vmatpush1.msra.mxu0 0.0
    %524 = vmatprep.subr.mxu0 0.0
    %525 = vmatpush1.msra.mxu0 0.0
    %526 = vmatprep.subr.mxu0 0.0
    %527 = vmatpush1.msra.mxu0 0.0
    %528 = vmatprep.subr.mxu0 0.0
    %529 = vmatpush1.msra.mxu0 0.0
    %530 = vmatprep.subr.mxu0 0.0
    %531 = vmatpush1.msra.mxu0 0.0
    %532 = vmatprep.subr.mxu0 0.0
    %533 = vmatpush1.msra.mxu0 0.0
    %534 = vmatprep.subr.mxu0 0.0
    %535 = vmatpush1.msra.mxu0 0.0
    %536 = vmatprep.subr.mxu0 0.0
    %537 = vmatpush1.msra.mxu0 0.0
    %538 = vmatprep.subr.mxu0 0.0
    %539 = vmatpush1.msra.mxu0 0.0
    %540 = vmatprep.subr.mxu0 0.0
    %541 = vmatpush1.msra.mxu0 0.0
    %542 = vmatprep.subr.mxu0 0.0
    %543 = vmatpush1.msra.mxu0 0.0
    %544 = vmatprep.subr.mxu0 0.0
    %545 = vmatpush1.msra.mxu0 0.0
    %546 = vmatprep.subr.mxu0 0.0
    %547 = vmatpush1.msra.mxu0 0.0
    %548 = vmatprep.subr.mxu0 0.0
    %549 = vmatpush1.msra.mxu0 0.0
    %550 = vmatprep.subr.mxu0 0.0
    %551 = vmatpush1.msra.mxu0 0.0
    %552 = vmatprep.subr.mxu0 0.0
    %553 = vmatpush1.msra.mxu0 0.0
    %554 = vmatprep.subr.mxu0 0.0
    %555 = vmatpush1.msra.mxu0 0.0
    %556 = vmatprep.subr.mxu0 0.0
    %557 = vmatpush1.msra.mxu0 0.0
    %558 = vmatprep.subr.mxu0 0.0
    %559 = vmatpush1.msra.mxu0 0.0
    %560 = vmatprep.subr.mxu0 0.0
    %561 = vmatpush1.msra.mxu0 0.0
    %562 = vmatprep.mubr.f32.mxu0 0.0
    %563 = vmatmul.mubr.f32.gmra.mrb[0].mxu0 %v496
    %v564 = vpop.f32.mrb[0].mxu0
    %v565 = vadd.f32 0.0, %v564
    %v566 = vpop.f32.mrb[0].mxu0
    %567 = vdwg.mxu0
    %v568 = vld [vmem:[#allocation8] sm:$0x1]
    %v569 = vld [vmem:[%s6] sm:$0x7]
    %v570 = vld [vmem:[#allocation11] sm:$0x1]
    %v571 = vld [vmem:[%s7] sm:$0x7]
    %v572 = vld [vmem:[#allocation13] sm:$0xff]
    %v573 = vld [vmem:[#allocation10] sm:$0xff]
    %v574 = vld [vmem:[#allocation10 + $0x8] sm:$0xff]
    %v575 = vld [vmem:[#allocation10 + $0x10] sm:$0xff]
    %v576 = vld [vmem:[#allocation10 + $0x18] sm:$0xff]
    %v577 = vld [vmem:[%s13] sm:$0xff]
    %v578 = vld [vmem:[%s13 + $0x8] sm:$0xff]
    %v579 = vld [vmem:[%s13 + $0x10] sm:$0xff]
    %v580 = vld [vmem:[%s13 + $0x18] sm:$0xff]
    %v581 = vld [vmem:[#allocation14] sm:$0x1]
    %v583 = vsel %vm146, %v568, 0
    %585 = vmatprep.subr.mxu0 0.0
    %586 = vmatpush1.msra.mxu0 %v573
    %587 = vmatprep.subr.mxu0 0.0
    %588 = vmatpush1.msra.mxu0 %v574
    %589 = vmatprep.subr.mxu0 0.0
    %590 = vmatpush1.msra.mxu0 %v575
    %591 = vmatprep.subr.mxu0 0.0
    %592 = vmatpush1.msra.mxu0 %v576
    %593 = vmatprep.subr.mxu0 0.0
    %594 = vmatpush1.msra.mxu0 0.0
    %595 = vmatprep.subr.mxu0 0.0
    %596 = vmatpush1.msra.mxu0 0.0
    %597 = vmatprep.subr.mxu0 0.0
    %598 = vmatpush1.msra.mxu0 0.0
    %599 = vmatprep.subr.mxu0 0.0
    %600 = vmatpush1.msra.mxu0 0.0
    %601 = vmatprep.subr.mxu0 0.0
    %602 = vmatpush1.msra.mxu0 0.0
    %603 = vmatprep.subr.mxu0 0.0
    %604 = vmatpush1.msra.mxu0 0.0
    %605 = vmatprep.subr.mxu0 0.0
    %606 = vmatpush1.msra.mxu0 0.0
    %607 = vmatprep.subr.mxu0 0.0
    %608 = vmatpush1.msra.mxu0 0.0
    %609 = vmatprep.subr.mxu0 0.0
    %610 = vmatpush1.msra.mxu0 0.0
    %611 = vmatprep.subr.mxu0 0.0
    %612 = vmatpush1.msra.mxu0 0.0
    %613 = vmatprep.subr.mxu0 0.0
    %614 = vmatpush1.msra.mxu0 0.0
    %615 = vmatprep.subr.mxu0 0.0
    %616 = vmatpush1.msra.mxu0 0.0
    %617 = vmatprep.subr.mxu0 0.0
    %618 = vmatpush1.msra.mxu0 0.0
    %619 = vmatprep.subr.mxu0 0.0
    %620 = vmatpush1.msra.mxu0 0.0
    %621 = vmatprep.subr.mxu0 0.0
    %622 = vmatpush1.msra.mxu0 0.0
    %623 = vmatprep.subr.mxu0 0.0
    %624 = vmatpush1.msra.mxu0 0.0
    %625 = vmatprep.subr.mxu0 0.0
    %626 = vmatpush1.msra.mxu0 0.0
    %627 = vmatprep.subr.mxu0 0.0
    %628 = vmatpush1.msra.mxu0 0.0
    %629 = vmatprep.subr.mxu0 0.0
    %630 = vmatpush1.msra.mxu0 0.0
    %631 = vmatprep.subr.mxu0 0.0
    %632 = vmatpush1.msra.mxu0 0.0
    %633 = vmatprep.subr.mxu0 0.0
    %634 = vmatpush1.msra.mxu0 0.0
    %635 = vmatprep.subr.mxu0 0.0
    %636 = vmatpush1.msra.mxu0 0.0
    %637 = vmatprep.subr.mxu0 0.0
    %638 = vmatpush1.msra.mxu0 0.0
    %639 = vmatprep.subr.mxu0 0.0
    %640 = vmatpush1.msra.mxu0 0.0
    %641 = vmatprep.subr.mxu0 0.0
    %642 = vmatpush1.msra.mxu0 0.0
    %643 = vmatprep.subr.mxu0 0.0
    %644 = vmatpush1.msra.mxu0 0.0
    %645 = vmatprep.subr.mxu0 0.0
    %646 = vmatpush1.msra.mxu0 0.0
    %647 = vmatprep.subr.mxu0 0.0
    %648 = vmatpush1.msra.mxu0 0.0
    %649 = vmatprep.mubr.f32.mxu0 0.0
    %650 = vmatmul.mubr.f32.gmra.mrb[0].mxu0 %v583
    %v651 = vpop.f32.mrb[0].mxu0
    %v652 = vadd.f32 0.0, %v651
    %v653 = vpop.f32.mrb[0].mxu0
    %654 = vdwg.mxu0
    %656 = vset.pattern.permute.xlu0 0
    %657 = vperm.xlu0 %656, %v569
    %v658 = vpop.permute.xlu0 %657
    %v661 = vlaneseq
    %v662 = vshrl.u32 %v661, 7
    %v663 = vsub.s32 0, %v662
    %v664 = vrot.slane %v570, %v663
    %v666 = vmul.f32 %v658, %v664
    %v667 = vlaneseq
    %v668 = vshrl.u32 %v667, 7
    %v669 = vsub.s32 0, %v668
    %v670 = vrot.slane %v652, %v669
    %v671 = vadd.f32 %v670, %v666
    %vm672 = vcmask 64512
    %v674 = vsel %vm672, %v571, 0
    %676 = vmatprep.subr.mxu0 0.0
    %677 = vmatpush1.msra.mxu0 %v572
    %678 = vmatprep.subr.mxu0 0.0
    %679 = vmatpush1.msra.mxu0 0.0
    %680 = vmatprep.subr.mxu0 0.0
    %681 = vmatpush1.msra.mxu0 0.0
    %682 = vmatprep.subr.mxu0 0.0
    %683 = vmatpush1.msra.mxu0 0.0
    %684 = vmatprep.subr.mxu0 0.0
    %685 = vmatpush1.msra.mxu0 0.0
    %686 = vmatprep.subr.mxu0 0.0
    %687 = vmatpush1.msra.mxu0 0.0
    %688 = vmatprep.subr.mxu0 0.0
    %689 = vmatpush1.msra.mxu0 0.0
    %690 = vmatprep.subr.mxu0 0.0
    %691 = vmatpush1.msra.mxu0 0.0
    %692 = vmatprep.subr.mxu0 0.0
    %693 = vmatpush1.msra.mxu0 0.0
    %694 = vmatprep.subr.mxu0 0.0
    %695 = vmatpush1.msra.mxu0 0.0
    %696 = vmatprep.subr.mxu0 0.0
    %697 = vmatpush1.msra.mxu0 0.0
    %698 = vmatprep.subr.mxu0 0.0
    %699 = vmatpush1.msra.mxu0 0.0
    %700 = vmatprep.subr.mxu0 0.0
    %701 = vmatpush1.msra.mxu0 0.0
    %702 = vmatprep.subr.mxu0 0.0
    %703 = vmatpush1.msra.mxu0 0.0
    %704 = vmatprep.subr.mxu0 0.0
    %705 = vmatpush1.msra.mxu0 0.0
    %706 = vmatprep.subr.mxu0 0.0
    %707 = vmatpush1.msra.mxu0 0.0
    %708 = vmatprep.subr.mxu0 0.0
    %709 = vmatpush1.msra.mxu0 0.0
    %710 = vmatprep.subr.mxu0 0.0
    %711 = vmatpush1.msra.mxu0 0.0
    %712 = vmatprep.subr.mxu0 0.0
    %713 = vmatpush1.msra.mxu0 0.0
    %714 = vmatprep.subr.mxu0 0.0
    %715 = vmatpush1.msra.mxu0 0.0
    %716 = vmatprep.subr.mxu0 0.0
    %717 = vmatpush1.msra.mxu0 0.0
    %718 = vmatprep.subr.mxu0 0.0
    %719 = vmatpush1.msra.mxu0 0.0
    %720 = vmatprep.subr.mxu0 0.0
    %721 = vmatpush1.msra.mxu0 0.0
    %722 = vmatprep.subr.mxu0 0.0
    %723 = vmatpush1.msra.mxu0 0.0
    %724 = vmatprep.subr.mxu0 0.0
    %725 = vmatpush1.msra.mxu0 0.0
    %726 = vmatprep.subr.mxu0 0.0
    %727 = vmatpush1.msra.mxu0 0.0
    %728 = vmatprep.subr.mxu0 0.0
    %729 = vmatpush1.msra.mxu0 0.0
    %730 = vmatprep.subr.mxu0 0.0
    %731 = vmatpush1.msra.mxu0 0.0
    %732 = vmatprep.subr.mxu0 0.0
    %733 = vmatpush1.msra.mxu0 0.0
    %734 = vmatprep.subr.mxu0 0.0
    %735 = vmatpush1.msra.mxu0 0.0
    %736 = vmatprep.subr.mxu0 0.0
    %737 = vmatpush1.msra.mxu0 0.0
    %738 = vmatprep.subr.mxu0 0.0
    %739 = vmatpush1.msra.mxu0 0.0
    %740 = vmatprep.mubr.f32.mxu0 0.0
    %741 = vmatmul.mubr.f32.gmra.mrb[0].mxu0 %v674
    %v742 = vpop.f32.mrb[0].mxu0
    %v743 = vadd.f32 0.0, %v742
    %v744 = vpop.f32.mrb[0].mxu0
    %745 = vdwg.mxu0
    %v746 = vadd.f32 %v671, %v743
    %v748 = vsel %vm146, %v565, 0
    %750 = vmatprep.subr.mxu0 0.0
    %751 = vmatpush1.msra.mxu0 %v577
    %752 = vmatprep.subr.mxu0 0.0
    %753 = vmatpush1.msra.mxu0 %v578
    %754 = vmatprep.subr.mxu0 0.0
    %755 = vmatpush1.msra.mxu0 %v579
    %756 = vmatprep.subr.mxu0 0.0
    %757 = vmatpush1.msra.mxu0 %v580
    %758 = vmatprep.subr.mxu0 0.0
    %759 = vmatpush1.msra.mxu0 0.0
    %760 = vmatprep.subr.mxu0 0.0
    %761 = vmatpush1.msra.mxu0 0.0
    %762 = vmatprep.subr.mxu0 0.0
    %763 = vmatpush1.msra.mxu0 0.0
    %764 = vmatprep.subr.mxu0 0.0
    %765 = vmatpush1.msra.mxu0 0.0
    %766 = vmatprep.subr.mxu0 0.0
    %767 = vmatpush1.msra.mxu0 0.0
    %768 = vmatprep.subr.mxu0 0.0
    %769 = vmatpush1.msra.mxu0 0.0
    %770 = vmatprep.subr.mxu0 0.0
    %771 = vmatpush1.msra.mxu0 0.0
    %772 = vmatprep.subr.mxu0 0.0
    %773 = vmatpush1.msra.mxu0 0.0
    %774 = vmatprep.subr.mxu0 0.0
    %775 = vmatpush1.msra.mxu0 0.0
    %776 = vmatprep.subr.mxu0 0.0
    %777 = vmatpush1.msra.mxu0 0.0
    %778 = vmatprep.subr.mxu0 0.0
    %779 = vmatpush1.msra.mxu0 0.0
    %780 = vmatprep.subr.mxu0 0.0
    %781 = vmatpush1.msra.mxu0 0.0
    %782 = vmatprep.subr.mxu0 0.0
    %783 = vmatpush1.msra.mxu0 0.0
    %784 = vmatprep.subr.mxu0 0.0
    %785 = vmatpush1.msra.mxu0 0.0
    %786 = vmatprep.subr.mxu0 0.0
    %787 = vmatpush1.msra.mxu0 0.0
    %788 = vmatprep.subr.mxu0 0.0
    %789 = vmatpush1.msra.mxu0 0.0
    %790 = vmatprep.subr.mxu0 0.0
    %791 = vmatpush1.msra.mxu0 0.0
    %792 = vmatprep.subr.mxu0 0.0
    %793 = vmatpush1.msra.mxu0 0.0
    %794 = vmatprep.subr.mxu0 0.0
    %795 = vmatpush1.msra.mxu0 0.0
    %796 = vmatprep.subr.mxu0 0.0
    %797 = vmatpush1.msra.mxu0 0.0
    %798 = vmatprep.subr.mxu0 0.0
    %799 = vmatpush1.msra.mxu0 0.0
    %800 = vmatprep.subr.mxu0 0.0
    %801 = vmatpush1.msra.mxu0 0.0
    %802 = vmatprep.subr.mxu0 0.0
    %803 = vmatpush1.msra.mxu0 0.0
    %804 = vmatprep.subr.mxu0 0.0
    %805 = vmatpush1.msra.mxu0 0.0
    %806 = vmatprep.subr.mxu0 0.0
    %807 = vmatpush1.msra.mxu0 0.0
    %808 = vmatprep.subr.mxu0 0.0
    %809 = vmatpush1.msra.mxu0 0.0
    %810 = vmatprep.subr.mxu0 0.0
    %811 = vmatpush1.msra.mxu0 0.0
    %812 = vmatprep.subr.mxu0 0.0
    %813 = vmatpush1.msra.mxu0 0.0
    %814 = vmatprep.mubr.f32.mxu0 0.0
    %815 = vmatmul.mubr.f32.gmra.mrb[0].mxu0 %v748
    %v816 = vpop.f32.mrb[0].mxu0
    %v817 = vadd.f32 0.0, %v816
    %v818 = vpop.f32.mrb[0].mxu0
    %819 = vdwg.mxu0
    %v820 = vadd.f32 %v746, %v817
    %v822 = vlaneseq
    %v823 = vshrl.u32 %v822, 7
    %v824 = vsub.s32 0, %v823
    %v825 = vrot.slane %v581, %v824
    %v827 = vadd.f32 %v820, %v825
    %v828 = vtanh.pop %v827
    %v829 = vmul.f32 %v828, %v828
    %vm830 = vcmask 256000
    %v831 = vsel %vm830, %v829, 0.0
    %832 = vadd.xlane.f32.xlu0 %v831
    %v833 = vpop.xlane.xlu0 %832
    %v834 = vmax.f32 %v833, 1e-24
    %v835 = vrsqrt.pop %v834
    %v836 = vmul.f32 %v828, %v835
    %837 = vst.msk [vmem:[#allocation16] sm:$0x7] %vm830, %v836
    // Predicated region
    $region78: #{_code_update_fwd.1} parent=1 // pred_check
      _
    $region79: #{_code_update_fwd.1} parent=1 // pred_check_branch
      %839 = sbr.rel (0) target = $region81
    $region80: #{_code_update_fwd.1} parent=1 // pred_region
      %s841 = ssub.s32 64, 64
      %842 = vsyncadd [#allocation7], %s841
      %s844 = sshll.u32 [#allocation16], 4
      %s845 = int_to_ptr.vmem [resolvable:$true] %s844
      %847 = dma.vmem_to_hbm [thread:$0]  %s845, 64, %s15, [#allocation7]
    $region81: #{_code_update_fwd.1} parent=1 // pred_fallthru
      _
    // Predicated region
    $region82: #{_code_update_fwd.1} parent=1 // pred_check
      _
    $region83: #{_code_update_fwd.1} parent=1 // pred_check_branch
      %849 = sbr.rel (0) target = $region85
    $region84: #{_code_update_fwd.1} parent=1 // pred_region
      %850 = dma.done [#allocation7], 64
    $region85: #{_code_update_fwd.1} parent=1 // pred_fallthru
      _
    %851 = vsyncpa [#allocation6], 1
    %852 = vsyncpa [#allocation9], 1
    %853 = vsyncpa [#allocation12], 1
    %854 = vsyncpa [#allocation15], 1
    %855 = vsyncpa [#allocation7], 1

</llo_original>
